<compile_context>
chip_gen: v6e
topology: v6e:2x2x1
jax: 0.10.0
libtpu: 0.0.40
codegen_flags: <defaults>
</compile_context>

<pallas_src>
import math

import jax
import jax.numpy as jnp
from jax.experimental import pallas as pl
from jax.experimental.pallas import tpu as pltpu


# -----------------------------------------------------------------------------
# Kernel 1: fused squeeze (global avg pool) + both excitation MLPs.
# Everything lives in VMEM as full blocks; the tiny matmuls are never padded
# to 128x128 tiles and never round-trip through HBM.
# -----------------------------------------------------------------------------
def _se_weights_kernel(x2_ref, x3_ref,
                       w1a2_ref, w1b2_ref, w2_2_ref, a2_ref,
                       w1a3_ref, w1b3_ref, w2_3_ref, a3_ref,
                       se2_ref, se3_ref):
    # x2_ref: (N, C, HW2), x3_ref: (N, C, HW3)  -- spatial in lanes.
    av2 = jnp.mean(x2_ref[...], axis=-1)        # (N, C)  == adaptive_avg_pool2d
    av3 = jnp.mean(x3_ref[...], axis=-1)        # (N, C)

    def excite(w1a, w1b, w2, alpha):
        # cat([av2, av3], -1) @ W1  ==  av2 @ W1[:C] + av3 @ W1[C:]
        h = (jnp.dot(av2, w1a, preferred_element_type=jnp.float32)
             + jnp.dot(av3, w1b, preferred_element_type=jnp.float32))
        h = jnp.where(h >= 0.0, h, alpha * h)   # PReLU (single shared alpha)
        return jax.nn.sigmoid(
            jnp.dot(h, w2, preferred_element_type=jnp.float32))

    se2_ref[...] = excite(w1a2_ref[...], w1b2_ref[...], w2_2_ref[...],
                          a2_ref[...])
    se3_ref[...] = excite(w1a3_ref[...], w1b3_ref[...], w2_3_ref[...],
                          a3_ref[...])


def pallas_se_weights(x2, x3, params):
    """x2/x3: (N, C, HW) f32  ->  (se_2d, se_3d), each (N, C) f32."""
    n, c, _ = x2.shape
    return pl.pallas_call(
        _se_weights_kernel,
        out_shape=(jax.ShapeDtypeStruct((n, c), jnp.float32),
                   jax.ShapeDtypeStruct((n, c), jnp.float32)),
    )(x2, x3,
      params["w1_2d"][:c], params["w1_2d"][c:],
      params["w2_2d"], params["alpha_2d"],
      params["w1_3d"][:c], params["w1_3d"][c:],
      params["w2_3d"], params["alpha_3d"])


# -----------------------------------------------------------------------------
# Kernel 2: channel-wise re-scaling  out = x * se (broadcast over spatial).
# Tiled over (batch, spatial) with lane-dense blocks; one HBM read + one write
# of the feature map, nothing else.
# -----------------------------------------------------------------------------
def _scale_kernel(x_ref, se_ref, o_ref):
    # x_ref: (1, C, TS), se_ref: (1, C, 1) -> lane broadcast.
    o_ref[...] = x_ref[...] * se_ref[...]


def _pick_spatial_tile(hw, max_tile=2048):
    if hw <= max_tile or hw % 128 != 0:
        return hw                      # full extent (always legal as a block)
    ts = (max_tile // 128) * 128
    while hw % ts != 0:
        ts -= 128
    return ts


def pallas_scale(x, se):
    """x: (N, C, H, W) f32, se: (N, C) f32 -> x * se[:, :, None, None]."""
    n, c, h, w = x.shape
    hw = h * w
    xf = x.reshape(n, c, hw)
    sef = se.reshape(n, c, 1)
    ts = _pick_spatial_tile(hw)
    grid = (n, hw // ts)
    out = pl.pallas_call(
        _scale_kernel,
        out_shape=jax.ShapeDtypeStruct((n, c, hw), x.dtype),
        grid=grid,
        in_specs=[
            pl.BlockSpec((1, c, ts), lambda i, s: (i, 0, s)),
            pl.BlockSpec((1, c, 1), lambda i, s: (i, 0, 0)),
        ],
        out_specs=pl.BlockSpec((1, c, ts), lambda i, s: (i, 0, s)),
        compiler_params=pltpu.CompilerParams(
            dimension_semantics=("parallel", "parallel")),
    )(xf, sef)
    return out.reshape(n, c, h, w)


# -----------------------------------------------------------------------------
# SE_block forward (PyTorch semantics, eval mode)
# -----------------------------------------------------------------------------
def se_block_forward(params, in_2d, in_3d):
    n, c, h2, w2 = in_2d.shape
    _, c3, h3, w3 = in_3d.shape
    assert c3 == c, "SE_block requires matching channel counts"
    x2 = in_2d.astype(jnp.float32).reshape(n, c, h2 * w2)
    x3 = in_3d.astype(jnp.float32).reshape(n, c, h3 * w3)
    se_2d, se_3d = pallas_se_weights(x2, x3, params)
    out_2d = pallas_scale(in_2d.astype(jnp.float32), se_2d)
    out_3d = pallas_scale(in_3d.astype(jnp.float32), se_3d)
    return out_2d, out_3d


# -----------------------------------------------------------------------------
# Deterministic parameter init (shapes match nn.Linear(bias=False) + nn.PReLU)
# -----------------------------------------------------------------------------
def init_se_params(key, in_channels, ratio=8):
    c = in_channels
    cr = max(c // ratio, 1)
    k1, k2, k3, k4 = jax.random.split(key, 4)

    def lin(k, fin, fout):
        bound = 1.0 / math.sqrt(fin)
        # stored as (in, out) == torch weight (out, in) transposed
        return jax.random.uniform(k, (fin, fout), jnp.float32, -bound, bound)

    return dict(
        w1_2d=lin(k1, 2 * c, cr), w2_2d=lin(k2, cr, c),
        alpha_2d=jnp.full((1, 1), 0.25, jnp.float32),
        w1_3d=lin(k3, 2 * c, cr), w2_3d=lin(k4, cr, c),
        alpha_3d=jnp.full((1, 1), 0.25, jnp.float32),
    )


# -----------------------------------------------------------------------------
# Pure-JAX reference (mirrors the torch forward exactly)
# -----------------------------------------------------------------------------
def se_block_ref(params, in_2d, in_3d):
    av2 = jnp.mean(in_2d, axis=(2, 3))
    av3 = jnp.mean(in_3d, axis=(2, 3))
    total = jnp.concatenate([av2, av3], axis=1)

    def dense(w1, w2, a):
        h = total @ w1
        h = jnp.where(h >= 0, h, a[0, 0] * h)
        return jax.nn.sigmoid(h @ w2)

    s2 = dense(params["w1_2d"], params["w2_2d"], params["alpha_2d"])
    s3 = dense(params["w1_3d"], params["w2_3d"], params["alpha_3d"])
    return in_2d * s2[:, :, None, None], in_3d * s3[:, :, None, None]


# -----------------------------------------------------------------------------
if __name__ == "__main__":
    key = jax.random.PRNGKey(0)
    kp, ka, kb = jax.random.split(key, 3)

    N, C = 2, 32                     # ratio=8 -> bottleneck of 4 channels
    in_2d = jax.random.normal(ka, (N, C, 16, 16), jnp.float32)
    in_3d = jax.random.normal(kb, (N, C, 8, 8), jnp.float32)
    params = init_se_params(kp, C, ratio=8)

    fwd = jax.jit(se_block_forward)
    out_2d, out_3d = jax.block_until_ready(fwd(params, in_2d, in_3d))

    ref_2d, ref_3d = se_block_ref(params, in_2d, in_3d)
    assert out_2d.shape == in_2d.shape and out_3d.shape == in_3d.shape
    assert jnp.allclose(out_2d, ref_2d, atol=1e-5, rtol=1e-5)
    assert jnp.allclose(out_3d, ref_3d, atol=1e-5, rtol=1e-5)
    print("KERNEL_OK")
</pallas_src>

<mosaic_0001>
module attributes {stable_mosaic.version = 11 : i64} {
  func.func @_scale_kernel(%arg0: i32, %arg1: i32, %arg2: memref<1x32x64xf32, #tpu.memory_space<vmem>>, %arg3: memref<1x32x1xf32, #tpu.memory_space<vmem>>, %arg4: memref<1x32x64xf32, #tpu.memory_space<vmem>>) attributes {dimension_semantics = [#tpu.dimension_semantics<parallel>, #tpu.dimension_semantics<parallel>], iteration_bounds = array<i64: 2, 1>, scalar_prefetch = 0 : i64, scratch_operands = 0 : i64, tpu.core_type = #tpu.core_type<tc>, window_params = [{transform_indices = @transform_0, window_bounds = array<i64: 1, 32, 64>}, {transform_indices = @transform_1, window_bounds = array<i64: 1, 32, 1>}, {transform_indices = @transform_2, window_bounds = array<i64: 1, 32, 64>}]} {
    %c0 = arith.constant 0 : index
    %c0_0 = arith.constant 0 : index
    %c0_1 = arith.constant 0 : index
    %0 = vector.load %arg2[%c0, %c0_0, %c0_1] : memref<1x32x64xf32, #tpu.memory_space<vmem>>, vector<1x32x64xf32>
    %c0_2 = arith.constant 0 : index
    %c0_3 = arith.constant 0 : index
    %c0_4 = arith.constant 0 : index
    %1 = vector.load %arg3[%c0_2, %c0_3, %c0_4] : memref<1x32x1xf32, #tpu.memory_space<vmem>>, vector<1x32x1xf32>
    %2 = vector.broadcast %1 : vector<1x32x1xf32> to vector<1x32x64xf32>
    %3 = arith.mulf %0, %2 : vector<1x32x64xf32>
    %c0_5 = arith.constant 0 : index
    %c0_6 = arith.constant 0 : index
    %c0_7 = arith.constant 0 : index
    %4 = vector.load %arg4[%c0_5, %c0_6, %c0_7] : memref<1x32x64xf32, #tpu.memory_space<vmem>>, vector<1x32x64xf32>
    tpu.vector_store %arg4[%c0_5, %c0_6, %c0_7], %3 {strides = array<i32>} : memref<1x32x64xf32, #tpu.memory_space<vmem>>, vector<1x32x64xf32>,
    return
  }
  func.func @transform_0(%arg0: i32, %arg1: i32) -> (i32, i32, i32) {
    %c0_i32 = arith.constant 0 : i32
    %c0_i32_0 = arith.constant 0 : i32
    return %arg0, %c0_i32, %arg1 : i32, i32, i32
  }
  func.func @transform_1(%arg0: i32, %arg1: i32) -> (i32, i32, i32) {
    %c0_i32 = arith.constant 0 : i32
    %c0_i32_0 = arith.constant 0 : i32
    %c0_i32_1 = arith.constant 0 : i32
    return %arg0, %c0_i32, %c0_i32_0 : i32, i32, i32
  }
  func.func @transform_2(%arg0: i32, %arg1: i32) -> (i32, i32, i32) {
    %c0_i32 = arith.constant 0 : i32
    %c0_i32_0 = arith.constant 0 : i32
    return %arg0, %c0_i32, %arg1 : i32, i32, i32
  }
}

module attributes {stable_mosaic.version = 11 : i64} {
  func.func @_scale_kernel(%arg0: i32, %arg1: i32, %arg2: memref<1x32x256xf32, #tpu.memory_space<vmem>>, %arg3: memref<1x32x1xf32, #tpu.memory_space<vmem>>, %arg4: memref<1x32x256xf32, #tpu.memory_space<vmem>>) attributes {dimension_semantics = [#tpu.dimension_semantics<parallel>, #tpu.dimension_semantics<parallel>], iteration_bounds = array<i64: 2, 1>, scalar_prefetch = 0 : i64, scratch_operands = 0 : i64, tpu.core_type = #tpu.core_type<tc>, window_params = [{transform_indices = @transform_0, window_bounds = array<i64: 1, 32, 256>}, {transform_indices = @transform_1, window_bounds = array<i64: 1, 32, 1>}, {transform_indices = @transform_2, window_bounds = array<i64: 1, 32, 256>}]} {
    %c0 = arith.constant 0 : index
    %c0_0 = arith.constant 0 : index
    %c0_1 = arith.constant 0 : index
    %0 = vector.load %arg2[%c0, %c0_0, %c0_1] : memref<1x32x256xf32, #tpu.memory_space<vmem>>, vector<1x32x256xf32>
    %c0_2 = arith.constant 0 : index
    %c0_3 = arith.constant 0 : index
    %c0_4 = arith.constant 0 : index
    %1 = vector.load %arg3[%c0_2, %c0_3, %c0_4] : memref<1x32x1xf32, #tpu.memory_space<vmem>>, vector<1x32x1xf32>
    %2 = vector.broadcast %1 : vector<1x32x1xf32> to vector<1x32x256xf32>
    %3 = arith.mulf %0, %2 : vector<1x32x256xf32>
    %c0_5 = arith.constant 0 : index
    %c0_6 = arith.constant 0 : index
    %c0_7 = arith.constant 0 : index
    %4 = vector.load %arg4[%c0_5, %c0_6, %c0_7] : memref<1x32x256xf32, #tpu.memory_space<vmem>>, vector<1x32x256xf32>
    tpu.vector_store %arg4[%c0_5, %c0_6, %c0_7], %3 {strides = array<i32>} : memref<1x32x256xf32, #tpu.memory_space<vmem>>, vector<1x32x256xf32>,
    return
  }
  func.func @transform_0(%arg0: i32, %arg1: i32) -> (i32, i32, i32) {
    %c0_i32 = arith.constant 0 : i32
    %c0_i32_0 = arith.constant 0 : i32
    return %arg0, %c0_i32, %arg1 : i32, i32, i32
  }
  func.func @transform_1(%arg0: i32, %arg1: i32) -> (i32, i32, i32) {
    %c0_i32 = arith.constant 0 : i32
    %c0_i32_0 = arith.constant 0 : i32
    %c0_i32_1 = arith.constant 0 : i32
    return %arg0, %c0_i32, %c0_i32_0 : i32, i32, i32
  }
  func.func @transform_2(%arg0: i32, %arg1: i32) -> (i32, i32, i32) {
    %c0_i32 = arith.constant 0 : i32
    %c0_i32_0 = arith.constant 0 : i32
    return %arg0, %c0_i32, %arg1 : i32, i32, i32
  }
}

module attributes {stable_mosaic.version = 11 : i64} {
  func.func @_se_weights_kernel(%arg0: memref<2x32x256xf32, #tpu.memory_space<vmem>>, %arg1: memref<2x32x64xf32, #tpu.memory_space<vmem>>, %arg2: memref<32x4xf32, #tpu.memory_space<vmem>>, %arg3: memref<32x4xf32, #tpu.memory_space<vmem>>, %arg4: memref<4x32xf32, #tpu.memory_space<vmem>>, %arg5: memref<1x1xf32, #tpu.memory_space<vmem>>, %arg6: memref<32x4xf32, #tpu.memory_space<vmem>>, %arg7: memref<32x4xf32, #tpu.memory_space<vmem>>, %arg8: memref<4x32xf32, #tpu.memory_space<vmem>>, %arg9: memref<1x1xf32, #tpu.memory_space<vmem>>, %arg10: memref<2x32xf32, #tpu.memory_space<vmem>>, %arg11: memref<2x32xf32, #tpu.memory_space<vmem>>) attributes {dimension_semantics = [], scalar_prefetch = 0 : i64, scratch_operands = 0 : i64, tpu.core_type = #tpu.core_type<tc>} {
    %c0 = arith.constant 0 : index
    %c0_0 = arith.constant 0 : index
    %c0_1 = arith.constant 0 : index
    %0 = vector.load %arg0[%c0, %c0_0, %c0_1] : memref<2x32x256xf32, #tpu.memory_space<vmem>>, vector<2x32x256xf32>
    %cst = arith.constant dense<0.000000e+00> : vector<2x32xf32>
    %1 = vector.multi_reduction <add>, %0, %cst [2] : vector<2x32x256xf32> to vector<2x32xf32>
    %cst_2 = arith.constant 2.560000e+02 : f32
    %2 = vector.broadcast %cst_2 : f32 to vector<2x32xf32>
    %3 = arith.divf %1, %2 : vector<2x32xf32>
    %c0_3 = arith.constant 0 : index
    %c0_4 = arith.constant 0 : index
    %c0_5 = arith.constant 0 : index
    %4 = vector.load %arg1[%c0_3, %c0_4, %c0_5] : memref<2x32x64xf32, #tpu.memory_space<vmem>>, vector<2x32x64xf32>
    %cst_6 = arith.constant dense<0.000000e+00> : vector<2x32xf32>
    %5 = vector.multi_reduction <add>, %4, %cst_6 [2] : vector<2x32x64xf32> to vector<2x32xf32>
    %cst_7 = arith.constant 6.400000e+01 : f32
    %6 = vector.broadcast %cst_7 : f32 to vector<2x32xf32>
    %7 = arith.divf %5, %6 : vector<2x32xf32>
    %c0_8 = arith.constant 0 : index
    %c0_9 = arith.constant 0 : index
    %8 = vector.load %arg2[%c0_8, %c0_9] : memref<32x4xf32, #tpu.memory_space<vmem>>, vector<32x4xf32>
    %c0_10 = arith.constant 0 : index
    %c0_11 = arith.constant 0 : index
    %9 = vector.load %arg3[%c0_10, %c0_11] : memref<32x4xf32, #tpu.memory_space<vmem>>, vector<32x4xf32>
    %c0_12 = arith.constant 0 : index
    %c0_13 = arith.constant 0 : index
    %10 = vector.load %arg4[%c0_12, %c0_13] : memref<4x32xf32, #tpu.memory_space<vmem>>, vector<4x32xf32>
    %c0_14 = arith.constant 0 : index
    %c0_15 = arith.constant 0 : index
    %11 = vector.load %arg5[%c0_14, %c0_15] : memref<1x1xf32, #tpu.memory_space<vmem>>, vector<1x1xf32>
    %cst_16 = arith.constant dense<0.000000e+00> : vector<2x4xf32>
    %12 = tpu.matmul %3, %8, %cst_16 {dimension_numbers = #tpu.dot_dimension_numbers<[1], [0], [0], [1], [0, 0, 1, 1], [], []>} : vector<2x32xf32>, vector<32x4xf32>, vector<2x4xf32> -> vector<2x4xf32>
    %cst_17 = arith.constant dense<0.000000e+00> : vector<2x4xf32>
    %13 = tpu.matmul %7, %9, %cst_17 {dimension_numbers = #tpu.dot_dimension_numbers<[1], [0], [0], [1], [0, 0, 1, 1], [], []>} : vector<2x32xf32>, vector<32x4xf32>, vector<2x4xf32> -> vector<2x4xf32>
    %14 = arith.addf %12, %13 : vector<2x4xf32>
    %cst_18 = arith.constant 0.000000e+00 : f32
    %15 = vector.broadcast %cst_18 : f32 to vector<2x4xf32>
    %16 = arith.cmpf oge, %14, %15 : vector<2x4xf32>
    %17 = vector.broadcast %11 : vector<1x1xf32> to vector<2x4xf32>
    %18 = arith.mulf %17, %14 : vector<2x4xf32>
    %19 = arith.select %16, %14, %18 : vector<2x4xi1>, vector<2x4xf32>
    %cst_19 = arith.constant dense<0.000000e+00> : vector<2x32xf32>
    %20 = tpu.matmul %19, %10, %cst_19 {dimension_numbers = #tpu.dot_dimension_numbers<[1], [0], [0], [1], [0, 0, 1, 1], [], []>} : vector<2x4xf32>, vector<4x32xf32>, vector<2x32xf32> -> vector<2x32xf32>
    %21 = arith.negf %20 : vector<2x32xf32>
    %22 = math.exp %21 : vector<2x32xf32>
    %cst_20 = arith.constant 1.000000e+00 : f32
    %23 = vector.broadcast %cst_20 : f32 to vector<2x32xf32>
    %24 = arith.addf %23, %22 : vector<2x32xf32>
    %25 = arith.divf %23, %24 : vector<2x32xf32>
    %c0_21 = arith.constant 0 : index
    %c0_22 = arith.constant 0 : index
    %26 = vector.load %arg10[%c0_21, %c0_22] : memref<2x32xf32, #tpu.memory_space<vmem>>, vector<2x32xf32>
    tpu.vector_store %arg10[%c0_21, %c0_22], %25 {strides = array<i32>} : memref<2x32xf32, #tpu.memory_space<vmem>>, vector<2x32xf32>,
    %c0_23 = arith.constant 0 : index
    %c0_24 = arith.constant 0 : index
    %27 = vector.load %arg6[%c0_23, %c0_24] : memref<32x4xf32, #tpu.memory_space<vmem>>, vector<32x4xf32>
    %c0_25 = arith.constant 0 : index
    %c0_26 = arith.constant 0 : index
    %28 = vector.load %arg7[%c0_25, %c0_26] : memref<32x4xf32, #tpu.memory_space<vmem>>, vector<32x4xf32>
    %c0_27 = arith.constant 0 : index
    %c0_28 = arith.constant 0 : index
    %29 = vector.load %arg8[%c0_27, %c0_28] : memref<4x32xf32, #tpu.memory_space<vmem>>, vector<4x32xf32>
    %c0_29 = arith.constant 0 : index
    %c0_30 = arith.constant 0 : index
    %30 = vector.load %arg9[%c0_29, %c0_30] : memref<1x1xf32, #tpu.memory_space<vmem>>, vector<1x1xf32>
    %cst_31 = arith.constant dense<0.000000e+00> : vector<2x4xf32>
    %31 = tpu.matmul %3, %27, %cst_31 {dimension_numbers = #tpu.dot_dimension_numbers<[1], [0], [0], [1], [0, 0, 1, 1], [], []>} : vector<2x32xf32>, vector<32x4xf32>, vector<2x4xf32> -> vector<2x4xf32>
    %cst_32 = arith.constant dense<0.000000e+00> : vector<2x4xf32>
    %32 = tpu.matmul %7, %28, %cst_32 {dimension_numbers = #tpu.dot_dimension_numbers<[1], [0], [0], [1], [0, 0, 1, 1], [], []>} : vector<2x32xf32>, vector<32x4xf32>, vector<2x4xf32> -> vector<2x4xf32>
    %33 = arith.addf %31, %32 : vector<2x4xf32>
    %cst_33 = arith.constant 0.000000e+00 : f32
    %34 = vector.broadcast %cst_33 : f32 to vector<2x4xf32>
    %35 = arith.cmpf oge, %33, %34 : vector<2x4xf32>
    %36 = vector.broadcast %30 : vector<1x1xf32> to vector<2x4xf32>
    %37 = arith.mulf %36, %33 : vector<2x4xf32>
    %38 = arith.select %35, %33, %37 : vector<2x4xi1>, vector<2x4xf32>
    %cst_34 = arith.constant dense<0.000000e+00> : vector<2x32xf32>
    %39 = tpu.matmul %38, %29, %cst_34 {dimension_numbers = #tpu.dot_dimension_numbers<[1], [0], [0], [1], [0, 0, 1, 1], [], []>} : vector<2x4xf32>, vector<4x32xf32>, vector<2x32xf32> -> vector<2x32xf32>
    %40 = arith.negf %39 : vector<2x32xf32>
    %41 = math.exp %40 : vector<2x32xf32>
    %cst_35 = arith.constant 1.000000e+00 : f32
    %42 = vector.broadcast %cst_35 : f32 to vector<2x32xf32>
    %43 = arith.addf %42, %41 : vector<2x32xf32>
    %44 = arith.divf %42, %43 : vector<2x32xf32>
    %c0_36 = arith.constant 0 : index
    %c0_37 = arith.constant 0 : index
    %45 = vector.load %arg11[%c0_36, %c0_37] : memref<2x32xf32, #tpu.memory_space<vmem>>, vector<2x32xf32>
    tpu.vector_store %arg11[%c0_36, %c0_37], %44 {strides = array<i32>} : memref<2x32xf32, #tpu.memory_space<vmem>>, vector<2x32xf32>,
    return
  }
}

</mosaic_0001>

<llo_original>
// kernel: se_block_forward.4
$region0: #{se_block_forward.4}
  #allocation0 [shape = 'u32[]', space=smem, size = 0x4, offset = 0x4, fixed_abs, tag = 'smem constant byte address 0x4 - core index']
  #allocation1 [shape = 'u32[144,128]{1,0:T(1,128)}', space=vmem, size = 0x12000, scoped, tag = 'internal scratch']
  %s0 = inlined_call_operand.vmem [shape: f32[2,32,256], index: 0, kind: input, shape index: {}]
  %s1 = inlined_call_operand.vmem [shape: f32[2,32,1], index: 1, kind: input, shape index: {}]
  %s2 = inlined_call_operand.vmem [shape: f32[2,32,256], index: 2, kind: output, shape index: {}]
  %s3 = sld [smem:[#allocation0]]
  $region41: #{se_block_forward.4} parent=0
    _
  %s5 = ssub.s32 1, %s3
  %s6 = scalar_select 0, %s5, %s3
  loop: start=0, step=1, limit=4
  $region2: #{se_block_forward.4} parent=0 // loop_pre_header
    _
  $region3: #{se_block_forward.4} parent=0 // loop_header
    %s8 = sphi 0, %s12
    %p9 = scmp.ge.s32.totalorder %s8, 4
    %s15 = sphi 0, %s27
    %s16 = sphi 0, %s23
    %s17 = sphi 0, %s15
    %s18 = sphi 0, %s16
    %s19 = sphi 0, %s17
    %s20 = sphi 0, %s18
    %s32 = sphi 0, %s34
    %s35 = sphi 0, %s32
    %s36 = sphi 0, %s35
    %s52 = sphi 0, %s36
    %s58 = sphi 0, %s60
    %s61 = sphi 0, %s58
    %s62 = sphi 0, %s61
    %s78 = sphi 0, %s62
    %s86 = sphi 0, %s88
    %s89 = sphi 0, %s86
    %s90 = sphi 0, %s89
    %s106 = sphi 0, %s90
  $region4: #{se_block_forward.4} parent=0 // loop_header_branch
    %11 = sbr.rel (%p9) target = $region8
  $region5: #{se_block_forward.4} parent=0 // loop_body
    %s13 = ssub.s32 %s8, 1
    %s14 = ssub.s32 %s8, 2
    %s21 = sadd.s32 1, %s16
    %p22 = scmp.ge.s32.totalorder %s21, 1
    %s23 = scalar_select %p22, 0, %s21
    %s24 = sadd.s32 1, %s15
    %s25 = scalar_select %p22, %s24, %s15
    %p26 = scmp.ge.s32.totalorder %s25, 2
    %s27 = scalar_select %p26, 0, %s25
    %s28 = ssub.s32 %s15, %s27
    %s29 = ssub.s32 %s16, %s23
    %s30 = sor.u32 %s28, %s29
    %p31 = scmp.eq.s32.totalorder %s30, 0
    %s33 = sadd.s32 %s32, 1
    %s34 = scalar_select %p31, %s32, %s33
    %p37 = pneg %p31
    %p38 = scmp.eq.s32.totalorder %s8, 1
    %p39 = por %p37, %p38
    %p40 = scmp.ne.s32.totalorder %s32, %s35
    %p41 = scmp.eq.s32.totalorder %s8, 0
    %p42 = por %p40, %p41
    %p43 = scmp.ne.s32.totalorder %s32, %s35
    %p44 = scmp.eq.s32.totalorder %s13, 1
    %p45 = por %p43, %p44
    %p46 = scmp.ne.s32.totalorder %s35, %s36
    %p47 = scmp.eq.s32.totalorder %s13, 0
    %p48 = por %p46, %p47
    %p49 = scmp.ne.s32.totalorder %s35, %s36
    %p50 = scmp.eq.s32.totalorder %s14, 1
    %p51 = por %p49, %p50
    %p53 = scmp.ne.s32.totalorder %s36, %s52
    %p54 = scmp.eq.s32.totalorder %s14, 0
    %p55 = por %p53, %p54
    %s56 = ssub.s32 %s15, %s27
    %p57 = scmp.eq.s32.totalorder %s56, 0
    %s59 = sadd.s32 %s58, 1
    %s60 = scalar_select %p57, %s58, %s59
    %p63 = pneg %p57
    %p64 = scmp.eq.s32.totalorder %s8, 1
    %p65 = por %p63, %p64
    %p66 = scmp.ne.s32.totalorder %s58, %s61
    %p67 = scmp.eq.s32.totalorder %s8, 0
    %p68 = por %p66, %p67
    %p69 = scmp.ne.s32.totalorder %s58, %s61
    %p70 = scmp.eq.s32.totalorder %s13, 1
    %p71 = por %p69, %p70
    %p72 = scmp.ne.s32.totalorder %s61, %s62
    %p73 = scmp.eq.s32.totalorder %s13, 0
    %p74 = por %p72, %p73
    %p75 = scmp.ne.s32.totalorder %s61, %s62
    %p76 = scmp.eq.s32.totalorder %s14, 1
    %p77 = por %p75, %p76
    %p79 = scmp.ne.s32.totalorder %s62, %s78
    %p80 = scmp.eq.s32.totalorder %s14, 0
    %p81 = por %p79, %p80
    %s82 = ssub.s32 %s15, %s27
    %s83 = ssub.s32 %s16, %s23
    %s84 = sor.u32 %s82, %s83
    %p85 = scmp.eq.s32.totalorder %s84, 0
    %s87 = sadd.s32 %s86, 1
    %s88 = scalar_select %p85, %s86, %s87
    %p91 = pneg %p85
    %p92 = scmp.eq.s32.totalorder %s8, 1
    %p93 = por %p91, %p92
    %p94 = scmp.ne.s32.totalorder %s86, %s89
    %p95 = scmp.eq.s32.totalorder %s8, 0
    %p96 = por %p94, %p95
    %p97 = scmp.ne.s32.totalorder %s86, %s89
    %p98 = scmp.eq.s32.totalorder %s13, 1
    %p99 = por %p97, %p98
    %p100 = scmp.ne.s32.totalorder %s89, %s90
    %p101 = scmp.eq.s32.totalorder %s13, 0
    %p102 = por %p100, %p101
    %p103 = scmp.ne.s32.totalorder %s89, %s90
    %p104 = scmp.eq.s32.totalorder %s14, 1
    %p105 = por %p103, %p104
    %p107 = scmp.ne.s32.totalorder %s90, %s106
    %p108 = scmp.eq.s32.totalorder %s14, 0
    %p109 = por %p107, %p108
    %p110 = scmp.le.s32.totalorder 1, %s8
    %p111 = scmp.lt.s32.totalorder %s8, 3
    %p112 = pnand %p110, %p111
    %p113 = pneg %p112
    // Predicated region
    $region9: #{se_block_forward.4} parent=5 // pred_check
      _
    $region10: #{se_block_forward.4} parent=5 // pred_check_branch
      %115 = sbr.rel (%p112) target = $region12
    $region11: #{se_block_forward.4} parent=5 // pred_region
      %s116 = ssub.s32 %s8, 1
    $region12: #{se_block_forward.4} parent=5 // pred_fallthru
      _
    %p117 = scmp.lt.s32.totalorder %s8, 2
    // Predicated region
    $region13: #{se_block_forward.4} parent=5 // pred_check
      %p118 = pneg %p117
    $region14: #{se_block_forward.4} parent=5 // pred_check_branch
      %120 = sbr.rel (%p118) target = $region16
    $region15: #{se_block_forward.4} parent=5 // pred_region
      // Predicated region
      $region17: #{se_block_forward.4} parent=15 // pred_check
        %p121 = pneg %p42
      $region18: #{se_block_forward.4} parent=15 // pred_check_branch
        %123 = sbr.rel (%p121) target = $region20
      $region19: #{se_block_forward.4} parent=15 // pred_region
        %s124 = smul.u32 2, %s16
        %p125 = scmp.lt.s32.totalorder %s15, 1
        %s126 = scalar_select %p125, %s15, 1
        %p127 = scmp.lt.s32.totalorder %s124, 1
        %s128 = scalar_select %p127, %s124, 1
        %s129 = smul.addr %s126, 8
        %s130 = sadd.s32 %s128, %s129
        %s131 = smul.addr %s130, 8
        %s132 = scalar_lea.vmem %s0, %s131
        %s133 = smul.u32 2, %s16
      $region20: #{se_block_forward.4} parent=15 // pred_fallthru
        _
      // Predicated region
      $region21: #{se_block_forward.4} parent=15 // pred_check
        %p134 = pneg %p68
      $region22: #{se_block_forward.4} parent=15 // pred_check_branch
        %136 = sbr.rel (%p134) target = $region24
      $region23: #{se_block_forward.4} parent=15 // pred_region
        %p137 = scmp.lt.s32.totalorder %s15, 1
        %s138 = scalar_select %p137, %s15, 1
        %s139 = smul.addr %s138, 4
        %s140 = smul.addr %s139, 8
        %s141 = scalar_lea.vmem %s1, %s140
      $region24: #{se_block_forward.4} parent=15 // pred_fallthru
        _
    $region16: #{se_block_forward.4} parent=5 // pred_fallthru
      _
    %p142 = scmp.le.s32.totalorder 1, %s8
    %p143 = scmp.lt.s32.totalorder %s8, 3
    %p144 = pnand %p142, %p143
    %p145 = pneg %p144
    // Predicated region
    $region25: #{se_block_forward.4} parent=5 // pred_check
      _
    $region26: #{se_block_forward.4} parent=5 // pred_check_branch
      %147 = sbr.rel (%p144) target = $region28
    $region27: #{se_block_forward.4} parent=5 // pred_region
      %s148 = ssub.s32 %s8, 1
      %s149 = smul.u32 2, %s18
      %p150 = scmp.lt.s32.totalorder %s17, 1
      %s151 = scalar_select %p150, %s17, 1
      %p152 = scmp.lt.s32.totalorder %s149, 1
      %s153 = scalar_select %p152, %s149, 1
      %s154 = smul.addr %s151, 8
      %s155 = sadd.s32 %s153, %s154
      %s156 = smul.addr %s155, 8
      %s157 = scalar_lea.vmem %s0, %s156
      %p158 = pneg %p48
      %p159 = pneg %p45
      %p160 = scmp.lt.s32.totalorder %s17, 1
      %s161 = scalar_select %p160, %s17, 1
      %s162 = smul.addr %s161, 4
      %s163 = smul.addr %s162, 8
      %s164 = scalar_lea.vmem %s1, %s163
      %p165 = pneg %p74
      %p166 = pneg %p71
      %p167 = pneg %p102
      %p168 = pneg %p99
      %s169 = smul.u32 2, %s18
      %p170 = scmp.lt.s32.totalorder %s17, 1
      %s171 = scalar_select %p170, %s17, 1
      %p172 = scmp.lt.s32.totalorder %s169, 1
      %s173 = scalar_select %p172, %s169, 1
      %s174 = smul.addr %s171, 8
      %s175 = sadd.s32 %s173, %s174
      %s176 = smul.addr %s175, 8
      %s177 = scalar_lea.vmem %s2, %s176
      %s178 = smul.u32 2, %s18
      %p179 = scmp.lt.s32.totalorder %s17, 1
      %s180 = scalar_select %p179, %s17, 1
      %p181 = scmp.lt.s32.totalorder %s178, 1
      %s182 = scalar_select %p181, %s178, 1
      %s183 = smul.addr %s180, 8
      %s184 = sadd.s32 %s182, %s183
      %s185 = smul.addr %s184, 8
      %s186 = scalar_lea.vmem %s0, %s185
      %s187 = smul.u32 2, %s18
      %p188 = scmp.lt.s32.totalorder %s17, 1
      %s189 = scalar_select %p188, %s17, 1
      %s190 = smul.addr %s189, 4
      %s191 = smul.addr %s190, 8
      %s192 = scalar_lea.vmem %s1, %s191
      %s193 = smul.u32 2, %s18
      %p194 = scmp.lt.s32.totalorder %s17, 1
      %s195 = scalar_select %p194, %s17, 1
      %p196 = scmp.lt.s32.totalorder %s193, 1
      %s197 = scalar_select %p196, %s193, 1
      %s198 = smul.addr %s195, 8
      %s199 = sadd.s32 %s197, %s198
      %s200 = smul.addr %s199, 8
      %s201 = scalar_lea.vmem %s2, %s200
      %s202 = smul.u32 2, %s18
      %v203 = vld [vmem:[%s186] sm:$0xff]
      %v204 = vld [vmem:[%s186 + $0x8] sm:$0xff]
      %v205 = vld [vmem:[%s186 + $0x10] sm:$0xff]
      %v206 = vld [vmem:[%s186 + $0x18] sm:$0xff]
      %v207 = vld [vmem:[%s186 + $0x20] sm:$0xff]
      %v208 = vld [vmem:[%s186 + $0x28] sm:$0xff]
      %v209 = vld [vmem:[%s186 + $0x30] sm:$0xff]
      %v210 = vld [vmem:[%s186 + $0x38] sm:$0xff]
      %v211 = vld [vmem:[%s192] sm:$0xff]
      %v212 = vld [vmem:[%s192 + $0x8] sm:$0xff]
      %v213 = vld [vmem:[%s192 + $0x10] sm:$0xff]
      %v214 = vld [vmem:[%s192 + $0x18] sm:$0xff]
      %216 = vset.pattern.permute.xlu0 0
      %217 = vperm.xlu0 %216, %v211
      %v218 = vpop.permute.xlu0 %217
      %221 = vset.pattern.permute.xlu0 0
      %222 = vperm.xlu0 %221, %v212
      %v223 = vpop.permute.xlu0 %222
      %226 = vset.pattern.permute.xlu0 0
      %227 = vperm.xlu0 %226, %v213
      %v228 = vpop.permute.xlu0 %227
      %231 = vset.pattern.permute.xlu0 0
      %232 = vperm.xlu0 %231, %v214
      %v233 = vpop.permute.xlu0 %232
      %v235 = vmul.f32 %v203, %v218
      %v236 = vmul.f32 %v204, %v218
      %v237 = vmul.f32 %v205, %v223
      %v238 = vmul.f32 %v206, %v223
      %v239 = vmul.f32 %v207, %v228
      %v240 = vmul.f32 %v208, %v228
      %v241 = vmul.f32 %v209, %v233
      %v242 = vmul.f32 %v210, %v233
      %243 = vst [vmem:[%s201] sm:$0xff] %v235
      %244 = vst [vmem:[%s201 + $0x8] sm:$0xff] %v236
      %245 = vst [vmem:[%s201 + $0x10] sm:$0xff] %v237
      %246 = vst [vmem:[%s201 + $0x18] sm:$0xff] %v238
      %247 = vst [vmem:[%s201 + $0x20] sm:$0xff] %v239
      %248 = vst [vmem:[%s201 + $0x28] sm:$0xff] %v240
      %249 = vst [vmem:[%s201 + $0x30] sm:$0xff] %v241
      %250 = vst [vmem:[%s201 + $0x38] sm:$0xff] %v242
      %s251 = smul.u32 2, %s18
      %p252 = scmp.lt.s32.totalorder %s17, 1
      %s253 = scalar_select %p252, %s17, 1
      %p254 = scmp.lt.s32.totalorder %s251, 1
      %s255 = scalar_select %p254, %s251, 1
      %s256 = smul.addr %s253, 8
      %s257 = sadd.s32 %s255, %s256
      %s258 = smul.addr %s257, 8
      %s259 = scalar_lea.vmem %s2, %s258
      // Predicated region
      $region29: #{se_block_forward.4} parent=27 // pred_check
        %p260 = pneg %p99
      $region30: #{se_block_forward.4} parent=27 // pred_check_branch
        %262 = sbr.rel (%p260) target = $region32
      $region31: #{se_block_forward.4} parent=27 // pred_region
        %s263 = smul.u32 2, %s18
      $region32: #{se_block_forward.4} parent=27 // pred_fallthru
        _
    $region28: #{se_block_forward.4} parent=5 // pred_fallthru
      _
    %p264 = scmp.le.s32.totalorder 2, %s8
    // Predicated region
    $region33: #{se_block_forward.4} parent=5 // pred_check
      %p265 = pneg %p264
    $region34: #{se_block_forward.4} parent=5 // pred_check_branch
      %267 = sbr.rel (%p265) target = $region36
    $region35: #{se_block_forward.4} parent=5 // pred_region
      %s268 = ssub.s32 %s8, 2
      // Predicated region
      $region37: #{se_block_forward.4} parent=35 // pred_check
        %p269 = pneg %p105
      $region38: #{se_block_forward.4} parent=35 // pred_check_branch
        %271 = sbr.rel (%p269) target = $region40
      $region39: #{se_block_forward.4} parent=35 // pred_region
        %s272 = smul.u32 2, %s20
        %p273 = scmp.lt.s32.totalorder %s19, 1
        %s274 = scalar_select %p273, %s19, 1
        %p275 = scmp.lt.s32.totalorder %s272, 1
        %s276 = scalar_select %p275, %s272, 1
        %s277 = smul.addr %s274, 8
        %s278 = sadd.s32 %s276, %s277
        %s279 = smul.addr %s278, 8
        %s280 = scalar_lea.vmem %s2, %s279
      $region40: #{se_block_forward.4} parent=35 // pred_fallthru
        _
    $region36: #{se_block_forward.4} parent=5 // pred_fallthru
      _
  $region6: #{se_block_forward.4} parent=0 // loop_footer
    %s12 = sadd.s32 1, %s8
  $region7: #{se_block_forward.4} parent=0 // loop_footer_branch
    %7 = sbr.rel target = $region3
  $region8: #{se_block_forward.4} parent=0 // loop_exit
    _

// kernel: se_block_forward.5
$region0: #{se_block_forward.5}
  #allocation0 [shape = 'u32[]', space=smem, size = 0x4, offset = 0x4, fixed_abs, tag = 'smem constant byte address 0x4 - core index']
  #allocation1 [shape = 'u32[144,128]{1,0:T(1,128)}', space=vmem, size = 0x12000, scoped, tag = 'internal scratch']
  %s0 = inlined_call_operand.vmem [shape: f32[2,32,64], index: 0, kind: input, shape index: {}]
  %s1 = inlined_call_operand.vmem [shape: f32[2,32,1], index: 1, kind: input, shape index: {}]
  %s2 = inlined_call_operand.vmem [shape: f32[2,32,64], index: 2, kind: output, shape index: {}]
  %s3 = sld [smem:[#allocation0]]
  $region41: #{se_block_forward.5} parent=0
    _
  %s5 = ssub.s32 1, %s3
  %s6 = scalar_select 0, %s5, %s3
  loop: start=0, step=1, limit=4
  $region2: #{se_block_forward.5} parent=0 // loop_pre_header
    _
  $region3: #{se_block_forward.5} parent=0 // loop_header
    %s8 = sphi 0, %s12
    %p9 = scmp.ge.s32.totalorder %s8, 4
    %s15 = sphi 0, %s27
    %s16 = sphi 0, %s23
    %s17 = sphi 0, %s15
    %s18 = sphi 0, %s16
    %s19 = sphi 0, %s17
    %s20 = sphi 0, %s18
    %s32 = sphi 0, %s34
    %s35 = sphi 0, %s32
    %s36 = sphi 0, %s35
    %s52 = sphi 0, %s36
    %s58 = sphi 0, %s60
    %s61 = sphi 0, %s58
    %s62 = sphi 0, %s61
    %s78 = sphi 0, %s62
    %s86 = sphi 0, %s88
    %s89 = sphi 0, %s86
    %s90 = sphi 0, %s89
    %s106 = sphi 0, %s90
  $region4: #{se_block_forward.5} parent=0 // loop_header_branch
    %11 = sbr.rel (%p9) target = $region8
  $region5: #{se_block_forward.5} parent=0 // loop_body
    %s13 = ssub.s32 %s8, 1
    %s14 = ssub.s32 %s8, 2
    %s21 = sadd.s32 1, %s16
    %p22 = scmp.ge.s32.totalorder %s21, 1
    %s23 = scalar_select %p22, 0, %s21
    %s24 = sadd.s32 1, %s15
    %s25 = scalar_select %p22, %s24, %s15
    %p26 = scmp.ge.s32.totalorder %s25, 2
    %s27 = scalar_select %p26, 0, %s25
    %s28 = ssub.s32 %s15, %s27
    %s29 = ssub.s32 %s16, %s23
    %s30 = sor.u32 %s28, %s29
    %p31 = scmp.eq.s32.totalorder %s30, 0
    %s33 = sadd.s32 %s32, 1
    %s34 = scalar_select %p31, %s32, %s33
    %p37 = pneg %p31
    %p38 = scmp.eq.s32.totalorder %s8, 1
    %p39 = por %p37, %p38
    %p40 = scmp.ne.s32.totalorder %s32, %s35
    %p41 = scmp.eq.s32.totalorder %s8, 0
    %p42 = por %p40, %p41
    %p43 = scmp.ne.s32.totalorder %s32, %s35
    %p44 = scmp.eq.s32.totalorder %s13, 1
    %p45 = por %p43, %p44
    %p46 = scmp.ne.s32.totalorder %s35, %s36
    %p47 = scmp.eq.s32.totalorder %s13, 0
    %p48 = por %p46, %p47
    %p49 = scmp.ne.s32.totalorder %s35, %s36
    %p50 = scmp.eq.s32.totalorder %s14, 1
    %p51 = por %p49, %p50
    %p53 = scmp.ne.s32.totalorder %s36, %s52
    %p54 = scmp.eq.s32.totalorder %s14, 0
    %p55 = por %p53, %p54
    %s56 = ssub.s32 %s15, %s27
    %p57 = scmp.eq.s32.totalorder %s56, 0
    %s59 = sadd.s32 %s58, 1
    %s60 = scalar_select %p57, %s58, %s59
    %p63 = pneg %p57
    %p64 = scmp.eq.s32.totalorder %s8, 1
    %p65 = por %p63, %p64
    %p66 = scmp.ne.s32.totalorder %s58, %s61
    %p67 = scmp.eq.s32.totalorder %s8, 0
    %p68 = por %p66, %p67
    %p69 = scmp.ne.s32.totalorder %s58, %s61
    %p70 = scmp.eq.s32.totalorder %s13, 1
    %p71 = por %p69, %p70
    %p72 = scmp.ne.s32.totalorder %s61, %s62
    %p73 = scmp.eq.s32.totalorder %s13, 0
    %p74 = por %p72, %p73
    %p75 = scmp.ne.s32.totalorder %s61, %s62
    %p76 = scmp.eq.s32.totalorder %s14, 1
    %p77 = por %p75, %p76
    %p79 = scmp.ne.s32.totalorder %s62, %s78
    %p80 = scmp.eq.s32.totalorder %s14, 0
    %p81 = por %p79, %p80
    %s82 = ssub.s32 %s15, %s27
    %s83 = ssub.s32 %s16, %s23
    %s84 = sor.u32 %s82, %s83
    %p85 = scmp.eq.s32.totalorder %s84, 0
    %s87 = sadd.s32 %s86, 1
    %s88 = scalar_select %p85, %s86, %s87
    %p91 = pneg %p85
    %p92 = scmp.eq.s32.totalorder %s8, 1
    %p93 = por %p91, %p92
    %p94 = scmp.ne.s32.totalorder %s86, %s89
    %p95 = scmp.eq.s32.totalorder %s8, 0
    %p96 = por %p94, %p95
    %p97 = scmp.ne.s32.totalorder %s86, %s89
    %p98 = scmp.eq.s32.totalorder %s13, 1
    %p99 = por %p97, %p98
    %p100 = scmp.ne.s32.totalorder %s89, %s90
    %p101 = scmp.eq.s32.totalorder %s13, 0
    %p102 = por %p100, %p101
    %p103 = scmp.ne.s32.totalorder %s89, %s90
    %p104 = scmp.eq.s32.totalorder %s14, 1
    %p105 = por %p103, %p104
    %p107 = scmp.ne.s32.totalorder %s90, %s106
    %p108 = scmp.eq.s32.totalorder %s14, 0
    %p109 = por %p107, %p108
    %p110 = scmp.le.s32.totalorder 1, %s8
    %p111 = scmp.lt.s32.totalorder %s8, 3
    %p112 = pnand %p110, %p111
    %p113 = pneg %p112
    // Predicated region
    $region9: #{se_block_forward.5} parent=5 // pred_check
      _
    $region10: #{se_block_forward.5} parent=5 // pred_check_branch
      %115 = sbr.rel (%p112) target = $region12
    $region11: #{se_block_forward.5} parent=5 // pred_region
      %s116 = ssub.s32 %s8, 1
    $region12: #{se_block_forward.5} parent=5 // pred_fallthru
      _
    %p117 = scmp.lt.s32.totalorder %s8, 2
    // Predicated region
    $region13: #{se_block_forward.5} parent=5 // pred_check
      %p118 = pneg %p117
    $region14: #{se_block_forward.5} parent=5 // pred_check_branch
      %120 = sbr.rel (%p118) target = $region16
    $region15: #{se_block_forward.5} parent=5 // pred_region
      // Predicated region
      $region17: #{se_block_forward.5} parent=15 // pred_check
        %p121 = pneg %p42
      $region18: #{se_block_forward.5} parent=15 // pred_check_branch
        %123 = sbr.rel (%p121) target = $region20
      $region19: #{se_block_forward.5} parent=15 // pred_region
        %p124 = scmp.lt.s32.totalorder %s15, 1
        %s125 = scalar_select %p124, %s15, 1
        %p126 = scmp.lt.s32.totalorder %s16, 0
        %s127 = scalar_select %p126, %s16, 0
        %s128 = smul.addr %s125, 4
        %s129 = sadd.s32 %s127, %s128
        %s130 = smul.addr %s129, 8
        %s131 = scalar_lea.vmem %s0, %s130
      $region20: #{se_block_forward.5} parent=15 // pred_fallthru
        _
      // Predicated region
      $region21: #{se_block_forward.5} parent=15 // pred_check
        %p132 = pneg %p68
      $region22: #{se_block_forward.5} parent=15 // pred_check_branch
        %134 = sbr.rel (%p132) target = $region24
      $region23: #{se_block_forward.5} parent=15 // pred_region
        %p135 = scmp.lt.s32.totalorder %s15, 1
        %s136 = scalar_select %p135, %s15, 1
        %s137 = smul.addr %s136, 4
        %s138 = smul.addr %s137, 8
        %s139 = scalar_lea.vmem %s1, %s138
      $region24: #{se_block_forward.5} parent=15 // pred_fallthru
        _
    $region16: #{se_block_forward.5} parent=5 // pred_fallthru
      _
    %p140 = scmp.le.s32.totalorder 1, %s8
    %p141 = scmp.lt.s32.totalorder %s8, 3
    %p142 = pnand %p140, %p141
    %p143 = pneg %p142
    // Predicated region
    $region25: #{se_block_forward.5} parent=5 // pred_check
      _
    $region26: #{se_block_forward.5} parent=5 // pred_check_branch
      %145 = sbr.rel (%p142) target = $region28
    $region27: #{se_block_forward.5} parent=5 // pred_region
      %s146 = ssub.s32 %s8, 1
      %p147 = scmp.lt.s32.totalorder %s17, 1
      %s148 = scalar_select %p147, %s17, 1
      %p149 = scmp.lt.s32.totalorder %s18, 0
      %s150 = scalar_select %p149, %s18, 0
      %s151 = smul.addr %s148, 4
      %s152 = sadd.s32 %s150, %s151
      %s153 = smul.addr %s152, 8
      %s154 = scalar_lea.vmem %s0, %s153
      %p155 = pneg %p48
      %p156 = pneg %p45
      %p157 = scmp.lt.s32.totalorder %s17, 1
      %s158 = scalar_select %p157, %s17, 1
      %s159 = smul.addr %s158, 4
      %s160 = smul.addr %s159, 8
      %s161 = scalar_lea.vmem %s1, %s160
      %p162 = pneg %p74
      %p163 = pneg %p71
      %p164 = pneg %p102
      %p165 = pneg %p99
      %p166 = scmp.lt.s32.totalorder %s17, 1
      %s167 = scalar_select %p166, %s17, 1
      %p168 = scmp.lt.s32.totalorder %s18, 0
      %s169 = scalar_select %p168, %s18, 0
      %s170 = smul.addr %s167, 4
      %s171 = sadd.s32 %s169, %s170
      %s172 = smul.addr %s171, 8
      %s173 = scalar_lea.vmem %s2, %s172
      %p174 = scmp.lt.s32.totalorder %s17, 1
      %s175 = scalar_select %p174, %s17, 1
      %p176 = scmp.lt.s32.totalorder %s18, 0
      %s177 = scalar_select %p176, %s18, 0
      %s178 = smul.addr %s175, 4
      %s179 = sadd.s32 %s177, %s178
      %s180 = smul.addr %s179, 8
      %s181 = scalar_lea.vmem %s0, %s180
      %p182 = scmp.lt.s32.totalorder %s17, 1
      %s183 = scalar_select %p182, %s17, 1
      %s184 = smul.addr %s183, 4
      %s185 = smul.addr %s184, 8
      %s186 = scalar_lea.vmem %s1, %s185
      %p187 = scmp.lt.s32.totalorder %s17, 1
      %s188 = scalar_select %p187, %s17, 1
      %p189 = scmp.lt.s32.totalorder %s18, 0
      %s190 = scalar_select %p189, %s18, 0
      %s191 = smul.addr %s188, 4
      %s192 = sadd.s32 %s190, %s191
      %s193 = smul.addr %s192, 8
      %s194 = scalar_lea.vmem %s2, %s193
      %v195 = vld [vmem:[%s181] sm:$0xff]
      %v196 = vld [vmem:[%s181 + $0x8] sm:$0xff]
      %v197 = vld [vmem:[%s181 + $0x10] sm:$0xff]
      %v198 = vld [vmem:[%s181 + $0x18] sm:$0xff]
      %v199 = vld [vmem:[%s186] sm:$0xff]
      %v200 = vld [vmem:[%s186 + $0x8] sm:$0xff]
      %v201 = vld [vmem:[%s186 + $0x10] sm:$0xff]
      %v202 = vld [vmem:[%s186 + $0x18] sm:$0xff]
      %204 = vset.pattern.permute.xlu0 0
      %205 = vperm.xlu0 %204, %v199
      %v206 = vpop.permute.xlu0 %205
      %209 = vset.pattern.permute.xlu0 0
      %210 = vperm.xlu0 %209, %v200
      %v211 = vpop.permute.xlu0 %210
      %214 = vset.pattern.permute.xlu0 0
      %215 = vperm.xlu0 %214, %v201
      %v216 = vpop.permute.xlu0 %215
      %219 = vset.pattern.permute.xlu0 0
      %220 = vperm.xlu0 %219, %v202
      %v221 = vpop.permute.xlu0 %220
      %v223 = vmul.f32 %v195, %v206
      %v224 = vmul.f32 %v196, %v211
      %v225 = vmul.f32 %v197, %v216
      %v226 = vmul.f32 %v198, %v221
      %vm227 = vcmask 523264
      %228 = vst.msk [vmem:[%s194] sm:$0xff] %vm227, %v223
      %229 = vst.msk [vmem:[%s194 + $0x8] sm:$0xff] %vm227, %v224
      %230 = vst.msk [vmem:[%s194 + $0x10] sm:$0xff] %vm227, %v225
      %231 = vst.msk [vmem:[%s194 + $0x18] sm:$0xff] %vm227, %v226
      %p232 = scmp.lt.s32.totalorder %s17, 1
      %s233 = scalar_select %p232, %s17, 1
      %p234 = scmp.lt.s32.totalorder %s18, 0
      %s235 = scalar_select %p234, %s18, 0
      %s236 = smul.addr %s233, 4
      %s237 = sadd.s32 %s235, %s236
      %s238 = smul.addr %s237, 8
      %s239 = scalar_lea.vmem %s2, %s238
      // Predicated region
      $region29: #{se_block_forward.5} parent=27 // pred_check
        %p240 = pneg %p99
      $region30: #{se_block_forward.5} parent=27 // pred_check_branch
        %242 = sbr.rel (%p240) target = $region32
      $region31: #{se_block_forward.5} parent=27 // pred_region
        _
      $region32: #{se_block_forward.5} parent=27 // pred_fallthru
        _
    $region28: #{se_block_forward.5} parent=5 // pred_fallthru
      _
    %p243 = scmp.le.s32.totalorder 2, %s8
    // Predicated region
    $region33: #{se_block_forward.5} parent=5 // pred_check
      %p244 = pneg %p243
    $region34: #{se_block_forward.5} parent=5 // pred_check_branch
      %246 = sbr.rel (%p244) target = $region36
    $region35: #{se_block_forward.5} parent=5 // pred_region
      %s247 = ssub.s32 %s8, 2
      // Predicated region
      $region37: #{se_block_forward.5} parent=35 // pred_check
        %p248 = pneg %p105
      $region38: #{se_block_forward.5} parent=35 // pred_check_branch
        %250 = sbr.rel (%p248) target = $region40
      $region39: #{se_block_forward.5} parent=35 // pred_region
        %p251 = scmp.lt.s32.totalorder %s19, 1
        %s252 = scalar_select %p251, %s19, 1
        %p253 = scmp.lt.s32.totalorder %s20, 0
        %s254 = scalar_select %p253, %s20, 0
        %s255 = smul.addr %s252, 4
        %s256 = sadd.s32 %s254, %s255
        %s257 = smul.addr %s256, 8
        %s258 = scalar_lea.vmem %s2, %s257
      $region40: #{se_block_forward.5} parent=35 // pred_fallthru
        _
    $region36: #{se_block_forward.5} parent=5 // pred_fallthru
      _
  $region6: #{se_block_forward.5} parent=0 // loop_footer
    %s12 = sadd.s32 1, %s8
  $region7: #{se_block_forward.5} parent=0 // loop_footer_branch
    %7 = sbr.rel target = $region3
  $region8: #{se_block_forward.5} parent=0 // loop_exit
    _

// kernel: se_block_forward.3
$region0: #{se_block_forward.3}
  #allocation0 [shape = 'u32[]', space=smem, size = 0x4, offset = 0x4, fixed_abs, tag = 'smem constant byte address 0x4 - core index']
  #allocation1 [shape = 'u32[144,128]{1,0:T(1,128)}', space=vmem, size = 0x12000, scoped, tag = 'internal scratch']
  #allocation2 [shape = 'f32[1,1]{1,0:T(1,128)S(1)}', space=vmem, size = 0x200, scoped, tag = 'scoped memory for se_block_forward.3']
  #allocation3 [shape = 'f32[1,1]{1,0:T(1,128)S(1)}', space=vmem, size = 0x200, scoped, tag = 'scoped memory for se_block_forward.3']
  %s0 = inlined_call_operand.vmem [shape: f32[2,32,256], index: 0, kind: input, shape index: {}]
  %s1 = inlined_call_operand.vmem [shape: f32[2,32,64], index: 1, kind: input, shape index: {}]
  %s2 = inlined_call_operand.vmem [shape: f32[32,4], index: 2, kind: input, shape index: {}]
  %s3 = inlined_call_operand.vmem [shape: f32[32,4], index: 3, kind: input, shape index: {}]
  %s4 = inlined_call_operand.vmem [shape: f32[4,32], index: 4, kind: input, shape index: {}]
  %s5 = inlined_call_operand.<no memory space> [shape: f32[1,1], index: 5, kind: input, shape index: {}]
  %s6 = inlined_call_operand.vmem [shape: f32[32,4], index: 6, kind: input, shape index: {}]
  %s7 = inlined_call_operand.vmem [shape: f32[32,4], index: 7, kind: input, shape index: {}]
  %s8 = inlined_call_operand.vmem [shape: f32[4,32], index: 8, kind: input, shape index: {}]
  %s9 = inlined_call_operand.<no memory space> [shape: f32[1,1], index: 9, kind: input, shape index: {}]
  %s10 = inlined_call_operand.vmem [shape: f32[2,32], index: 10, kind: output, shape index: {0}]
  %s11 = inlined_call_operand.vmem [shape: f32[2,32], index: 11, kind: output, shape index: {1}]
  %12 = xla_tuple %s10, %s11
  %s13 = sld [smem:[#allocation0]]
  $region58: #{se_block_forward.3} parent=0
    _
  %s15 = ssub.s32 1, %s13
  %s16 = scalar_select 0, %s15, %s13
  %v17 = vstv %s5
  %18 = vst [vmem:[#allocation2] sm:$0x1] %v17
  %v19 = vstv %s9
  %20 = vst [vmem:[#allocation3] sm:$0x1] %v19
  // Predicated region
  $region2: #{se_block_forward.3} parent=0 // pred_check
    _
  $region3: #{se_block_forward.3} parent=0 // pred_check_branch
    %22 = sbr.rel (0) target = $region5
  $region4: #{se_block_forward.3} parent=0 // pred_region
    _
  $region5: #{se_block_forward.3} parent=0 // pred_fallthru
    _
  // Predicated region
  $region6: #{se_block_forward.3} parent=0 // pred_check
    _
  $region7: #{se_block_forward.3} parent=0 // pred_check_branch
    %24 = sbr.rel (0) target = $region9
  $region8: #{se_block_forward.3} parent=0 // pred_region
    _
  $region9: #{se_block_forward.3} parent=0 // pred_fallthru
    _
  // Predicated region
  $region10: #{se_block_forward.3} parent=0 // pred_check
    _
  $region11: #{se_block_forward.3} parent=0 // pred_check_branch
    %26 = sbr.rel (0) target = $region13
  $region12: #{se_block_forward.3} parent=0 // pred_region
    _
  $region13: #{se_block_forward.3} parent=0 // pred_fallthru
    _
  // Predicated region
  $region14: #{se_block_forward.3} parent=0 // pred_check
    _
  $region15: #{se_block_forward.3} parent=0 // pred_check_branch
    %28 = sbr.rel (0) target = $region17
  $region16: #{se_block_forward.3} parent=0 // pred_region
    _
  $region17: #{se_block_forward.3} parent=0 // pred_fallthru
    _
  // Predicated region
  $region18: #{se_block_forward.3} parent=0 // pred_check
    _
  $region19: #{se_block_forward.3} parent=0 // pred_check_branch
    %30 = sbr.rel (0) target = $region21
  $region20: #{se_block_forward.3} parent=0 // pred_region
    _
  $region21: #{se_block_forward.3} parent=0 // pred_fallthru
    _
  // Predicated region
  $region22: #{se_block_forward.3} parent=0 // pred_check
    _
  $region23: #{se_block_forward.3} parent=0 // pred_check_branch
    %32 = sbr.rel (0) target = $region25
  $region24: #{se_block_forward.3} parent=0 // pred_region
    _
  $region25: #{se_block_forward.3} parent=0 // pred_fallthru
    _
  // Predicated region
  $region26: #{se_block_forward.3} parent=0 // pred_check
    _
  $region27: #{se_block_forward.3} parent=0 // pred_check_branch
    %34 = sbr.rel (0) target = $region29
  $region28: #{se_block_forward.3} parent=0 // pred_region
    _
  $region29: #{se_block_forward.3} parent=0 // pred_fallthru
    _
  // Predicated region
  $region30: #{se_block_forward.3} parent=0 // pred_check
    _
  $region31: #{se_block_forward.3} parent=0 // pred_check_branch
    %36 = sbr.rel (0) target = $region33
  $region32: #{se_block_forward.3} parent=0 // pred_region
    _
  $region33: #{se_block_forward.3} parent=0 // pred_fallthru
    _
  // Predicated region
  $region34: #{se_block_forward.3} parent=0 // pred_check
    _
  $region35: #{se_block_forward.3} parent=0 // pred_check_branch
    %38 = sbr.rel (0) target = $region37
  $region36: #{se_block_forward.3} parent=0 // pred_region
    _
  $region37: #{se_block_forward.3} parent=0 // pred_fallthru
    _
  // Predicated region
  $region38: #{se_block_forward.3} parent=0 // pred_check
    _
  $region39: #{se_block_forward.3} parent=0 // pred_check_branch
    %40 = sbr.rel (0) target = $region41
  $region40: #{se_block_forward.3} parent=0 // pred_region
    _
  $region41: #{se_block_forward.3} parent=0 // pred_fallthru
    _
  %v41 = vld [vmem:[%s0] sm:$0xff]
  %v42 = vld [vmem:[%s0 + $0x8] sm:$0xff]
  %v43 = vld [vmem:[%s0 + $0x10] sm:$0xff]
  %v44 = vld [vmem:[%s0 + $0x18] sm:$0xff]
  %v45 = vld [vmem:[%s0 + $0x20] sm:$0xff]
  %v46 = vld [vmem:[%s0 + $0x28] sm:$0xff]
  %v47 = vld [vmem:[%s0 + $0x30] sm:$0xff]
  %v48 = vld [vmem:[%s0 + $0x38] sm:$0xff]
  %v49 = vld [vmem:[%s0 + $0x40] sm:$0xff]
  %v50 = vld [vmem:[%s0 + $0x48] sm:$0xff]
  %v51 = vld [vmem:[%s0 + $0x50] sm:$0xff]
  %v52 = vld [vmem:[%s0 + $0x58] sm:$0xff]
  %v53 = vld [vmem:[%s0 + $0x60] sm:$0xff]
  %v54 = vld [vmem:[%s0 + $0x68] sm:$0xff]
  %v55 = vld [vmem:[%s0 + $0x70] sm:$0xff]
  %v56 = vld [vmem:[%s0 + $0x78] sm:$0xff]
  %v57 = vadd.f32 %v41, %v42
  %58 = vadd.xlane.f32.xlu0 %v57
  %v59 = vpop.xlane.xlu0 %58
  %v60 = vadd.f32 %v43, %v44
  %61 = vadd.xlane.f32.xlu0 %v60
  %v62 = vpop.xlane.xlu0 %61
  %v63 = vadd.f32 %v45, %v46
  %64 = vadd.xlane.f32.xlu0 %v63
  %v65 = vpop.xlane.xlu0 %64
  %v66 = vadd.f32 %v47, %v48
  %67 = vadd.xlane.f32.xlu0 %v66
  %v68 = vpop.xlane.xlu0 %67
  %v69 = vadd.f32 %v49, %v50
  %70 = vadd.xlane.f32.xlu0 %v69
  %v71 = vpop.xlane.xlu0 %70
  %v72 = vadd.f32 %v51, %v52
  %73 = vadd.xlane.f32.xlu0 %v72
  %v74 = vpop.xlane.xlu0 %73
  %v75 = vadd.f32 %v53, %v54
  %76 = vadd.xlane.f32.xlu0 %v75
  %v77 = vpop.xlane.xlu0 %76
  %v78 = vadd.f32 %v55, %v56
  %79 = vadd.xlane.f32.xlu0 %v78
  %v80 = vpop.xlane.xlu0 %79
  %v81 = vrcp.pop 256.0
  %v82 = vmul.f32 %v59, %v81
  %v83 = vmul.f32 %v62, %v81
  %v84 = vmul.f32 %v65, %v81
  %v85 = vmul.f32 %v68, %v81
  %v86 = vmul.f32 %v71, %v81
  %v87 = vmul.f32 %v74, %v81
  %v88 = vmul.f32 %v77, %v81
  %v89 = vmul.f32 %v80, %v81
  %v90 = vld [vmem:[%s1] sm:$0xff]
  %v91 = vld [vmem:[%s1 + $0x8] sm:$0xff]
  %v92 = vld [vmem:[%s1 + $0x10] sm:$0xff]
  %v93 = vld [vmem:[%s1 + $0x18] sm:$0xff]
  %v94 = vld [vmem:[%s1 + $0x20] sm:$0xff]
  %v95 = vld [vmem:[%s1 + $0x28] sm:$0xff]
  %v96 = vld [vmem:[%s1 + $0x30] sm:$0xff]
  %v97 = vld [vmem:[%s1 + $0x38] sm:$0xff]
  %vm98 = vcmask 523264
  %v99 = vsel %vm98, %v90, 0.0
  %100 = vadd.xlane.f32.xlu0 %v99
  %v101 = vpop.xlane.xlu0 %100
  %v102 = vsel %vm98, %v91, 0.0
  %103 = vadd.xlane.f32.xlu0 %v102
  %v104 = vpop.xlane.xlu0 %103
  %v105 = vsel %vm98, %v92, 0.0
  %106 = vadd.xlane.f32.xlu0 %v105
  %v107 = vpop.xlane.xlu0 %106
  %v108 = vsel %vm98, %v93, 0.0
  %109 = vadd.xlane.f32.xlu0 %v108
  %v110 = vpop.xlane.xlu0 %109
  %v111 = vsel %vm98, %v94, 0.0
  %112 = vadd.xlane.f32.xlu0 %v111
  %v113 = vpop.xlane.xlu0 %112
  %v114 = vsel %vm98, %v95, 0.0
  %115 = vadd.xlane.f32.xlu0 %v114
  %v116 = vpop.xlane.xlu0 %115
  %v117 = vsel %vm98, %v96, 0.0
  %118 = vadd.xlane.f32.xlu0 %v117
  %v119 = vpop.xlane.xlu0 %118
  %v120 = vsel %vm98, %v97, 0.0
  %121 = vadd.xlane.f32.xlu0 %v120
  %v122 = vpop.xlane.xlu0 %121
  %v123 = vrcp.pop 64.0
  %v124 = vmul.f32 %v101, %v123
  %v125 = vmul.f32 %v104, %v123
  %v126 = vmul.f32 %v107, %v123
  %v127 = vmul.f32 %v110, %v123
  %v128 = vmul.f32 %v113, %v123
  %v129 = vmul.f32 %v116, %v123
  %v130 = vmul.f32 %v119, %v123
  %v131 = vmul.f32 %v122, %v123
  %v132 = vld [vmem:[%s2] sm:$0xff]
  %v133 = vld [vmem:[%s2 + $0x8] sm:$0xff]
  %v134 = vld [vmem:[%s2 + $0x10] sm:$0xff]
  %v135 = vld [vmem:[%s2 + $0x18] sm:$0xff]
  %v136 = vld [vmem:[%s3] sm:$0xff]
  %v137 = vld [vmem:[%s3 + $0x8] sm:$0xff]
  %v138 = vld [vmem:[%s3 + $0x10] sm:$0xff]
  %v139 = vld [vmem:[%s3 + $0x18] sm:$0xff]
  %v140 = vld [vmem:[%s4] sm:$0xf]
  %v141 = vld [vmem:[#allocation2] sm:$0x1]
  %v150 = vlaneseq
  %v151 = vand.u32 %v150, 127
  %v152 = vlaneseq
  %v153 = vshrl.u32 %v152, 7
  %v154 = vsub.s32 %v151, %v153
  %v155 = vrot.slane %v124, %v154
  %v156 = vadd.s32 %v151, 4294967288
  %v157 = vlaneseq
  %v158 = vshrl.u32 %v157, 7
  %v159 = vsub.s32 %v156, %v158
  %v160 = vrot.slane %v125, %v159
  %vm161 = vcmask 130112
  %v162 = vsel %vm161, %v160, %v155
  %v163 = vadd.s32 %v151, 4294967280
  %v164 = vlaneseq
  %v165 = vshrl.u32 %v164, 7
  %v166 = vsub.s32 %v163, %v165
  %v167 = vrot.slane %v126, %v166
  %vm168 = vcmask 195712
  %v169 = vsel %vm168, %v167, %v162
  %v170 = vadd.s32 %v151, 4294967272
  %v171 = vlaneseq
  %v172 = vshrl.u32 %v171, 7
  %v173 = vsub.s32 %v170, %v172
  %v174 = vrot.slane %v127, %v173
  %vm175 = vcmask 261312
  %v176 = vsel %vm175, %v174, %v169
  %v177 = vlaneseq
  %v178 = vshrl.u32 %v177, 7
  %v179 = vsub.s32 %v151, %v178
  %v180 = vrot.slane %v128, %v179
  %v181 = vlaneseq
  %v182 = vshrl.u32 %v181, 7
  %v183 = vsub.s32 %v156, %v182
  %v184 = vrot.slane %v129, %v183
  %v185 = vsel %vm161, %v184, %v180
  %v186 = vlaneseq
  %v187 = vshrl.u32 %v186, 7
  %v188 = vsub.s32 %v163, %v187
  %v189 = vrot.slane %v130, %v188
  %v190 = vsel %vm168, %v189, %v185
  %v191 = vlaneseq
  %v192 = vshrl.u32 %v191, 7
  %v193 = vsub.s32 %v170, %v192
  %v194 = vrot.slane %v131, %v193
  %v195 = vsel %vm175, %v194, %v190
  %vm196 = vcmask 1041409
  %v197 = vsel %vm196, %v195, %v176
  %vm198 = vcmask 261120
  %v199 = vsel %vm198, %v197, 0
  %201 = vmatprep.subr.mxu0 0.0
  %202 = vmatpush1.msra.mxu0 0.0
  %203 = vmatprep.subr.mxu0 0.0
  %204 = vmatpush1.msra.mxu0 0.0
  %205 = vmatprep.subr.mxu0 0.0
  %206 = vmatpush1.msra.mxu0 0.0
  %207 = vmatprep.subr.mxu0 0.0
  %208 = vmatpush1.msra.mxu0 0.0
  %209 = vmatprep.subr.mxu0 0.0
  %210 = vmatpush1.msra.mxu0 0.0
  %211 = vmatprep.subr.mxu0 0.0
  %212 = vmatpush1.msra.mxu0 0.0
  %213 = vmatprep.subr.mxu0 0.0
  %214 = vmatpush1.msra.mxu0 0.0
  %215 = vmatprep.subr.mxu0 0.0
  %216 = vmatpush1.msra.mxu0 0.0
  %217 = vmatprep.subr.mxu0 0.0
  %218 = vmatpush1.msra.mxu0 0.0
  %219 = vmatprep.subr.mxu0 0.0
  %220 = vmatpush1.msra.mxu0 0.0
  %221 = vmatprep.subr.mxu0 0.0
  %222 = vmatpush1.msra.mxu0 0.0
  %223 = vmatprep.subr.mxu0 0.0
  %224 = vmatpush1.msra.mxu0 0.0
  %225 = vmatprep.subr.mxu0 0.0
  %226 = vmatpush1.msra.mxu0 %v139
  %227 = vmatprep.subr.mxu0 0.0
  %228 = vmatpush1.msra.mxu0 %v138
  %229 = vmatprep.subr.mxu0 0.0
  %230 = vmatpush1.msra.mxu0 %v137
  %231 = vmatprep.subr.mxu0 0.0
  %232 = vmatpush1.msra.mxu0 %v136
  %233 = vmatprep.subr.mxu0 0.0
  %234 = vmatpush2.msra.mxu0 0.0
  %235 = vmatprep.subr.mxu0 0.0
  %236 = vmatpush2.msra.mxu0 0.0
  %237 = vmatprep.subr.mxu0 0.0
  %238 = vmatpush2.msra.mxu0 0.0
  %239 = vmatprep.subr.mxu0 0.0
  %240 = vmatpush2.msra.mxu0 0.0
  %241 = vmatprep.subr.mxu0 0.0
  %242 = vmatpush2.msra.mxu0 0.0
  %243 = vmatprep.subr.mxu0 0.0
  %244 = vmatpush2.msra.mxu0 0.0
  %245 = vmatprep.subr.mxu0 0.0
  %246 = vmatpush2.msra.mxu0 0.0
  %247 = vmatprep.subr.mxu0 0.0
  %248 = vmatpush2.msra.mxu0 0.0
  %249 = vmatprep.subr.mxu0 0.0
  %250 = vmatpush2.msra.mxu0 0.0
  %251 = vmatprep.subr.mxu0 0.0
  %252 = vmatpush2.msra.mxu0 0.0
  %253 = vmatprep.subr.mxu0 0.0
  %254 = vmatpush2.msra.mxu0 0.0
  %255 = vmatprep.subr.mxu0 0.0
  %256 = vmatpush2.msra.mxu0 0.0
  %257 = vmatprep.subr.mxu0 0.0
  %258 = vmatpush2.msra.mxu0 0.0
  %259 = vmatprep.subr.mxu0 0.0
  %260 = vmatpush2.msra.mxu0 0.0
  %261 = vmatprep.subr.mxu0 0.0
  %262 = vmatpush2.msra.mxu0 0.0
  %263 = vmatprep.subr.mxu0 0.0
  %264 = vmatpush2.msra.mxu0 0.0
  %265 = vmatprep.mubr.f32.mxu0 0.0
  %266 = vmatmul.mubr.f32.gmra.mxu0 %v199
  %v267 = vpop.f32.mrf.mxu0
  %v268 = vadd.f32 0.0, %v267
  %v269 = vpop.f32.mrf.mxu0
  %270 = vdwg.mxu0
  %v279 = vlaneseq
  %v280 = vshrl.u32 %v279, 7
  %v281 = vsub.s32 %v151, %v280
  %v282 = vrot.slane %v82, %v281
  %v283 = vlaneseq
  %v284 = vshrl.u32 %v283, 7
  %v285 = vsub.s32 %v156, %v284
  %v286 = vrot.slane %v83, %v285
  %v287 = vsel %vm161, %v286, %v282
  %v288 = vlaneseq
  %v289 = vshrl.u32 %v288, 7
  %v290 = vsub.s32 %v163, %v289
  %v291 = vrot.slane %v84, %v290
  %v292 = vsel %vm168, %v291, %v287
  %v293 = vlaneseq
  %v294 = vshrl.u32 %v293, 7
  %v295 = vsub.s32 %v170, %v294
  %v296 = vrot.slane %v85, %v295
  %v297 = vsel %vm175, %v296, %v292
  %v298 = vlaneseq
  %v299 = vshrl.u32 %v298, 7
  %v300 = vsub.s32 %v151, %v299
  %v301 = vrot.slane %v86, %v300
  %v302 = vlaneseq
  %v303 = vshrl.u32 %v302, 7
  %v304 = vsub.s32 %v156, %v303
  %v305 = vrot.slane %v87, %v304
  %v306 = vsel %vm161, %v305, %v301
  %v307 = vlaneseq
  %v308 = vshrl.u32 %v307, 7
  %v309 = vsub.s32 %v163, %v308
  %v310 = vrot.slane %v88, %v309
  %v311 = vsel %vm168, %v310, %v306
  %v312 = vlaneseq
  %v313 = vshrl.u32 %v312, 7
  %v314 = vsub.s32 %v170, %v313
  %v315 = vrot.slane %v89, %v314
  %v316 = vsel %vm175, %v315, %v311
  %v317 = vsel %vm196, %v316, %v297
  %v318 = vsel %vm198, %v317, 0
  %320 = vmatprep.subr.mxu0 0.0
  %321 = vmatpush1.msra.mxu0 0.0
  %322 = vmatprep.subr.mxu0 0.0
  %323 = vmatpush1.msra.mxu0 0.0
  %324 = vmatprep.subr.mxu0 0.0
  %325 = vmatpush1.msra.mxu0 0.0
  %326 = vmatprep.subr.mxu0 0.0
  %327 = vmatpush1.msra.mxu0 0.0
  %328 = vmatprep.subr.mxu0 0.0
  %329 = vmatpush1.msra.mxu0 0.0
  %330 = vmatprep.subr.mxu0 0.0
  %331 = vmatpush1.msra.mxu0 0.0
  %332 = vmatprep.subr.mxu0 0.0
  %333 = vmatpush1.msra.mxu0 0.0
  %334 = vmatprep.subr.mxu0 0.0
  %335 = vmatpush1.msra.mxu0 0.0
  %336 = vmatprep.subr.mxu0 0.0
  %337 = vmatpush1.msra.mxu0 0.0
  %338 = vmatprep.subr.mxu0 0.0
  %339 = vmatpush1.msra.mxu0 0.0
  %340 = vmatprep.subr.mxu0 0.0
  %341 = vmatpush1.msra.mxu0 0.0
  %342 = vmatprep.subr.mxu0 0.0
  %343 = vmatpush1.msra.mxu0 0.0
  %344 = vmatprep.subr.mxu0 0.0
  %345 = vmatpush1.msra.mxu0 %v135
  %346 = vmatprep.subr.mxu0 0.0
  %347 = vmatpush1.msra.mxu0 %v134
  %348 = vmatprep.subr.mxu0 0.0
  %349 = vmatpush1.msra.mxu0 %v133
  %350 = vmatprep.subr.mxu0 0.0
  %351 = vmatpush1.msra.mxu0 %v132
  %352 = vmatprep.subr.mxu0 0.0
  %353 = vmatpush2.msra.mxu0 0.0
  %354 = vmatprep.subr.mxu0 0.0
  %355 = vmatpush2.msra.mxu0 0.0
  %356 = vmatprep.subr.mxu0 0.0
  %357 = vmatpush2.msra.mxu0 0.0
  %358 = vmatprep.subr.mxu0 0.0
  %359 = vmatpush2.msra.mxu0 0.0
  %360 = vmatprep.subr.mxu0 0.0
  %361 = vmatpush2.msra.mxu0 0.0
  %362 = vmatprep.subr.mxu0 0.0
  %363 = vmatpush2.msra.mxu0 0.0
  %364 = vmatprep.subr.mxu0 0.0
  %365 = vmatpush2.msra.mxu0 0.0
  %366 = vmatprep.subr.mxu0 0.0
  %367 = vmatpush2.msra.mxu0 0.0
  %368 = vmatprep.subr.mxu0 0.0
  %369 = vmatpush2.msra.mxu0 0.0
  %370 = vmatprep.subr.mxu0 0.0
  %371 = vmatpush2.msra.mxu0 0.0
  %372 = vmatprep.subr.mxu0 0.0
  %373 = vmatpush2.msra.mxu0 0.0
  %374 = vmatprep.subr.mxu0 0.0
  %375 = vmatpush2.msra.mxu0 0.0
  %376 = vmatprep.subr.mxu0 0.0
  %377 = vmatpush2.msra.mxu0 0.0
  %378 = vmatprep.subr.mxu0 0.0
  %379 = vmatpush2.msra.mxu0 0.0
  %380 = vmatprep.subr.mxu0 0.0
  %381 = vmatpush2.msra.mxu0 0.0
  %382 = vmatprep.subr.mxu0 0.0
  %383 = vmatpush2.msra.mxu0 0.0
  %384 = vmatprep.mubr.f32.mxu0 0.0
  %385 = vmatmul.mubr.f32.gmra.mxu0 %v318
  %v386 = vpop.f32.mrf.mxu0
  %v387 = vadd.f32 %v268, %v386
  %v388 = vpop.f32.mrf.mxu0
  %389 = vdwg.mxu0
  %vm390 = vcmp.ge.f32.partialorder %v387, 0.0
  %v392 = vlaneseq
  %v393 = vshrl.u32 %v392, 7
  %v394 = vsub.s32 0, %v393
  %v395 = vrot.slane %v141, %v394
  %396 = vset.pattern.permute.xlu0 0
  %397 = vperm.xlu0 %396, %v395
  %v398 = vpop.permute.xlu0 %397
  %v400 = vmul.f32 %v398, %v387
  %v401 = vsel %vm390, %v387, %v400
  %vm402 = vcmask 31744
  %v404 = vsel %vm402, %v401, 0
  %vm406 = vcmask 1043456
  %v408 = vsel %vm406, %v140, 0
  %410 = vmatprep.subr.mxu0 0.0
  %411 = vmatpush1.msra.mxu0 0.0
  %412 = vmatprep.subr.mxu0 0.0
  %413 = vmatpush1.msra.mxu0 0.0
  %414 = vmatprep.subr.mxu0 0.0
  %415 = vmatpush1.msra.mxu0 0.0
  %416 = vmatprep.subr.mxu0 0.0
  %417 = vmatpush1.msra.mxu0 0.0
  %418 = vmatprep.subr.mxu0 0.0
  %419 = vmatpush1.msra.mxu0 0.0
  %420 = vmatprep.subr.mxu0 0.0
  %421 = vmatpush1.msra.mxu0 0.0
  %422 = vmatprep.subr.mxu0 0.0
  %423 = vmatpush1.msra.mxu0 0.0
  %424 = vmatprep.subr.mxu0 0.0
  %425 = vmatpush1.msra.mxu0 0.0
  %426 = vmatprep.subr.mxu0 0.0
  %427 = vmatpush1.msra.mxu0 0.0
  %428 = vmatprep.subr.mxu0 0.0
  %429 = vmatpush1.msra.mxu0 0.0
  %430 = vmatprep.subr.mxu0 0.0
  %431 = vmatpush1.msra.mxu0 0.0
  %432 = vmatprep.subr.mxu0 0.0
  %433 = vmatpush1.msra.mxu0 0.0
  %434 = vmatprep.subr.mxu0 0.0
  %435 = vmatpush1.msra.mxu0 0.0
  %436 = vmatprep.subr.mxu0 0.0
  %437 = vmatpush1.msra.mxu0 0.0
  %438 = vmatprep.subr.mxu0 0.0
  %439 = vmatpush1.msra.mxu0 0.0
  %440 = vmatprep.subr.mxu0 0.0
  %441 = vmatpush1.msra.mxu0 %v408
  %442 = vmatprep.subr.mxu0 0.0
  %443 = vmatpush2.msra.mxu0 0.0
  %444 = vmatprep.subr.mxu0 0.0
  %445 = vmatpush2.msra.mxu0 0.0
  %446 = vmatprep.subr.mxu0 0.0
  %447 = vmatpush2.msra.mxu0 0.0
  %448 = vmatprep.subr.mxu0 0.0
  %449 = vmatpush2.msra.mxu0 0.0
  %450 = vmatprep.subr.mxu0 0.0
  %451 = vmatpush2.msra.mxu0 0.0
  %452 = vmatprep.subr.mxu0 0.0
  %453 = vmatpush2.msra.mxu0 0.0
  %454 = vmatprep.subr.mxu0 0.0
  %455 = vmatpush2.msra.mxu0 0.0
  %456 = vmatprep.subr.mxu0 0.0
  %457 = vmatpush2.msra.mxu0 0.0
  %458 = vmatprep.subr.mxu0 0.0
  %459 = vmatpush2.msra.mxu0 0.0
  %460 = vmatprep.subr.mxu0 0.0
  %461 = vmatpush2.msra.mxu0 0.0
  %462 = vmatprep.subr.mxu0 0.0
  %463 = vmatpush2.msra.mxu0 0.0
  %464 = vmatprep.subr.mxu0 0.0
  %465 = vmatpush2.msra.mxu0 0.0
  %466 = vmatprep.subr.mxu0 0.0
  %467 = vmatpush2.msra.mxu0 0.0
  %468 = vmatprep.subr.mxu0 0.0
  %469 = vmatpush2.msra.mxu0 0.0
  %470 = vmatprep.subr.mxu0 0.0
  %471 = vmatpush2.msra.mxu0 0.0
  %472 = vmatprep.subr.mxu0 0.0
  %473 = vmatpush2.msra.mxu0 0.0
  %474 = vmatprep.mubr.f32.mxu0 0.0
  %475 = vmatmul.mubr.f32.gmra.mxu0 %v404
  %v476 = vpop.f32.mrf.mxu0
  %v477 = vadd.f32 0.0, %v476
  %v478 = vpop.f32.mrf.mxu0
  %479 = vdwg.mxu0
  %v480 = vxor.u32 %v477, 2147483648
  %v481 = vmul.f32 %v480, 1.442695
  %v482 = vpow.pop %v481
  %v483 = vadd.f32 %v482, 1.0
  %v484 = vrcp.pop %v483
  %v485 = vmul.f32 1.0, %v484
  %vm486 = vcmask 254976
  %487 = vst.msk [vmem:[%s10] sm:$0x3] %vm486, %v485
  %v488 = vld [vmem:[%s6] sm:$0xff]
  %v489 = vld [vmem:[%s6 + $0x8] sm:$0xff]
  %v490 = vld [vmem:[%s6 + $0x10] sm:$0xff]
  %v491 = vld [vmem:[%s6 + $0x18] sm:$0xff]
  %v492 = vld [vmem:[%s7] sm:$0xff]
  %v493 = vld [vmem:[%s7 + $0x8] sm:$0xff]
  %v494 = vld [vmem:[%s7 + $0x10] sm:$0xff]
  %v495 = vld [vmem:[%s7 + $0x18] sm:$0xff]
  %v496 = vld [vmem:[%s8] sm:$0xf]
  %v497 = vld [vmem:[#allocation3] sm:$0x1]
  %498 = vmatprep.subr.mxu0 0.0
  %499 = vmatpush1.msra.mxu0 0.0
  %500 = vmatprep.subr.mxu0 0.0
  %501 = vmatpush1.msra.mxu0 0.0
  %502 = vmatprep.subr.mxu0 0.0
  %503 = vmatpush1.msra.mxu0 0.0
  %504 = vmatprep.subr.mxu0 0.0
  %505 = vmatpush1.msra.mxu0 0.0
  %506 = vmatprep.subr.mxu0 0.0
  %507 = vmatpush1.msra.mxu0 0.0
  %508 = vmatprep.subr.mxu0 0.0
  %509 = vmatpush1.msra.mxu0 0.0
  %510 = vmatprep.subr.mxu0 0.0
  %511 = vmatpush1.msra.mxu0 0.0
  %512 = vmatprep.subr.mxu0 0.0
  %513 = vmatpush1.msra.mxu0 0.0
  %514 = vmatprep.subr.mxu0 0.0
  %515 = vmatpush1.msra.mxu0 0.0
  %516 = vmatprep.subr.mxu0 0.0
  %517 = vmatpush1.msra.mxu0 0.0
  %518 = vmatprep.subr.mxu0 0.0
  %519 = vmatpush1.msra.mxu0 0.0
  %520 = vmatprep.subr.mxu0 0.0
  %521 = vmatpush1.msra.mxu0 0.0
  %522 = vmatprep.subr.mxu0 0.0
  %523 = vmatpush1.msra.mxu0 %v495
  %524 = vmatprep.subr.mxu0 0.0
  %525 = vmatpush1.msra.mxu0 %v494
  %526 = vmatprep.subr.mxu0 0.0
  %527 = vmatpush1.msra.mxu0 %v493
  %528 = vmatprep.subr.mxu0 0.0
  %529 = vmatpush1.msra.mxu0 %v492
  %530 = vmatprep.subr.mxu0 0.0
  %531 = vmatpush2.msra.mxu0 0.0
  %532 = vmatprep.subr.mxu0 0.0
  %533 = vmatpush2.msra.mxu0 0.0
  %534 = vmatprep.subr.mxu0 0.0
  %535 = vmatpush2.msra.mxu0 0.0
  %536 = vmatprep.subr.mxu0 0.0
  %537 = vmatpush2.msra.mxu0 0.0
  %538 = vmatprep.subr.mxu0 0.0
  %539 = vmatpush2.msra.mxu0 0.0
  %540 = vmatprep.subr.mxu0 0.0
  %541 = vmatpush2.msra.mxu0 0.0
  %542 = vmatprep.subr.mxu0 0.0
  %543 = vmatpush2.msra.mxu0 0.0
  %544 = vmatprep.subr.mxu0 0.0
  %545 = vmatpush2.msra.mxu0 0.0
  %546 = vmatprep.subr.mxu0 0.0
  %547 = vmatpush2.msra.mxu0 0.0
  %548 = vmatprep.subr.mxu0 0.0
  %549 = vmatpush2.msra.mxu0 0.0
  %550 = vmatprep.subr.mxu0 0.0
  %551 = vmatpush2.msra.mxu0 0.0
  %552 = vmatprep.subr.mxu0 0.0
  %553 = vmatpush2.msra.mxu0 0.0
  %554 = vmatprep.subr.mxu0 0.0
  %555 = vmatpush2.msra.mxu0 0.0
  %556 = vmatprep.subr.mxu0 0.0
  %557 = vmatpush2.msra.mxu0 0.0
  %558 = vmatprep.subr.mxu0 0.0
  %559 = vmatpush2.msra.mxu0 0.0
  %560 = vmatprep.subr.mxu0 0.0
  %561 = vmatpush2.msra.mxu0 0.0
  %562 = vmatprep.mubr.f32.mxu0 0.0
  %563 = vmatmul.mubr.f32.gmra.mxu0 %v199
  %v564 = vpop.f32.mrf.mxu0
  %v565 = vadd.f32 0.0, %v564
  %v566 = vpop.f32.mrf.mxu0
  %567 = vdwg.mxu0
  %568 = vmatprep.subr.mxu0 0.0
  %569 = vmatpush1.msra.mxu0 0.0
  %570 = vmatprep.subr.mxu0 0.0
  %571 = vmatpush1.msra.mxu0 0.0
  %572 = vmatprep.subr.mxu0 0.0
  %573 = vmatpush1.msra.mxu0 0.0
  %574 = vmatprep.subr.mxu0 0.0
  %575 = vmatpush1.msra.mxu0 0.0
  %576 = vmatprep.subr.mxu0 0.0
  %577 = vmatpush1.msra.mxu0 0.0
  %578 = vmatprep.subr.mxu0 0.0
  %579 = vmatpush1.msra.mxu0 0.0
  %580 = vmatprep.subr.mxu0 0.0
  %581 = vmatpush1.msra.mxu0 0.0
  %582 = vmatprep.subr.mxu0 0.0
  %583 = vmatpush1.msra.mxu0 0.0
  %584 = vmatprep.subr.mxu0 0.0
  %585 = vmatpush1.msra.mxu0 0.0
  %586 = vmatprep.subr.mxu0 0.0
  %587 = vmatpush1.msra.mxu0 0.0
  %588 = vmatprep.subr.mxu0 0.0
  %589 = vmatpush1.msra.mxu0 0.0
  %590 = vmatprep.subr.mxu0 0.0
  %591 = vmatpush1.msra.mxu0 0.0
  %592 = vmatprep.subr.mxu0 0.0
  %593 = vmatpush1.msra.mxu0 %v491
  %594 = vmatprep.subr.mxu0 0.0
  %595 = vmatpush1.msra.mxu0 %v490
  %596 = vmatprep.subr.mxu0 0.0
  %597 = vmatpush1.msra.mxu0 %v489
  %598 = vmatprep.subr.mxu0 0.0
  %599 = vmatpush1.msra.mxu0 %v488
  %600 = vmatprep.subr.mxu0 0.0
  %601 = vmatpush2.msra.mxu0 0.0
  %602 = vmatprep.subr.mxu0 0.0
  %603 = vmatpush2.msra.mxu0 0.0
  %604 = vmatprep.subr.mxu0 0.0
  %605 = vmatpush2.msra.mxu0 0.0
  %606 = vmatprep.subr.mxu0 0.0
  %607 = vmatpush2.msra.mxu0 0.0
  %608 = vmatprep.subr.mxu0 0.0
  %609 = vmatpush2.msra.mxu0 0.0
  %610 = vmatprep.subr.mxu0 0.0
  %611 = vmatpush2.msra.mxu0 0.0
  %612 = vmatprep.subr.mxu0 0.0
  %613 = vmatpush2.msra.mxu0 0.0
  %614 = vmatprep.subr.mxu0 0.0
  %615 = vmatpush2.msra.mxu0 0.0
  %616 = vmatprep.subr.mxu0 0.0
  %617 = vmatpush2.msra.mxu0 0.0
  %618 = vmatprep.subr.mxu0 0.0
  %619 = vmatpush2.msra.mxu0 0.0
  %620 = vmatprep.subr.mxu0 0.0
  %621 = vmatpush2.msra.mxu0 0.0
  %622 = vmatprep.subr.mxu0 0.0
  %623 = vmatpush2.msra.mxu0 0.0
  %624 = vmatprep.subr.mxu0 0.0
  %625 = vmatpush2.msra.mxu0 0.0
  %626 = vmatprep.subr.mxu0 0.0
  %627 = vmatpush2.msra.mxu0 0.0
  %628 = vmatprep.subr.mxu0 0.0
  %629 = vmatpush2.msra.mxu0 0.0
  %630 = vmatprep.subr.mxu0 0.0
  %631 = vmatpush2.msra.mxu0 0.0
  %632 = vmatprep.mubr.f32.mxu0 0.0
  %633 = vmatmul.mubr.f32.gmra.mxu0 %v318
  %v634 = vpop.f32.mrf.mxu0
  %v635 = vadd.f32 %v565, %v634
  %v636 = vpop.f32.mrf.mxu0
  %637 = vdwg.mxu0
  %vm638 = vcmp.ge.f32.partialorder %v635, 0.0
  %v640 = vlaneseq
  %v641 = vshrl.u32 %v640, 7
  %v642 = vsub.s32 0, %v641
  %v643 = vrot.slane %v497, %v642
  %644 = vset.pattern.permute.xlu0 0
  %645 = vperm.xlu0 %644, %v643
  %v646 = vpop.permute.xlu0 %645
  %v648 = vmul.f32 %v646, %v635
  %v649 = vsel %vm638, %v635, %v648
  %v651 = vsel %vm402, %v649, 0
  %v654 = vsel %vm406, %v496, 0
  %656 = vmatprep.subr.mxu0 0.0
  %657 = vmatpush1.msra.mxu0 0.0
  %658 = vmatprep.subr.mxu0 0.0
  %659 = vmatpush1.msra.mxu0 0.0
  %660 = vmatprep.subr.mxu0 0.0
  %661 = vmatpush1.msra.mxu0 0.0
  %662 = vmatprep.subr.mxu0 0.0
  %663 = vmatpush1.msra.mxu0 0.0
  %664 = vmatprep.subr.mxu0 0.0
  %665 = vmatpush1.msra.mxu0 0.0
  %666 = vmatprep.subr.mxu0 0.0
  %667 = vmatpush1.msra.mxu0 0.0
  %668 = vmatprep.subr.mxu0 0.0
  %669 = vmatpush1.msra.mxu0 0.0
  %670 = vmatprep.subr.mxu0 0.0
  %671 = vmatpush1.msra.mxu0 0.0
  %672 = vmatprep.subr.mxu0 0.0
  %673 = vmatpush1.msra.mxu0 0.0
  %674 = vmatprep.subr.mxu0 0.0
  %675 = vmatpush1.msra.mxu0 0.0
  %676 = vmatprep.subr.mxu0 0.0
  %677 = vmatpush1.msra.mxu0 0.0
  %678 = vmatprep.subr.mxu0 0.0
  %679 = vmatpush1.msra.mxu0 0.0
  %680 = vmatprep.subr.mxu0 0.0
  %681 = vmatpush1.msra.mxu0 0.0
  %682 = vmatprep.subr.mxu0 0.0
  %683 = vmatpush1.msra.mxu0 0.0
  %684 = vmatprep.subr.mxu0 0.0
  %685 = vmatpush1.msra.mxu0 0.0
  %686 = vmatprep.subr.mxu0 0.0
  %687 = vmatpush1.msra.mxu0 %v654
  %688 = vmatprep.subr.mxu0 0.0
  %689 = vmatpush2.msra.mxu0 0.0
  %690 = vmatprep.subr.mxu0 0.0
  %691 = vmatpush2.msra.mxu0 0.0
  %692 = vmatprep.subr.mxu0 0.0
  %693 = vmatpush2.msra.mxu0 0.0
  %694 = vmatprep.subr.mxu0 0.0
  %695 = vmatpush2.msra.mxu0 0.0
  %696 = vmatprep.subr.mxu0 0.0
  %697 = vmatpush2.msra.mxu0 0.0
  %698 = vmatprep.subr.mxu0 0.0
  %699 = vmatpush2.msra.mxu0 0.0
  %700 = vmatprep.subr.mxu0 0.0
  %701 = vmatpush2.msra.mxu0 0.0
  %702 = vmatprep.subr.mxu0 0.0
  %703 = vmatpush2.msra.mxu0 0.0
  %704 = vmatprep.subr.mxu0 0.0
  %705 = vmatpush2.msra.mxu0 0.0
  %706 = vmatprep.subr.mxu0 0.0
  %707 = vmatpush2.msra.mxu0 0.0
  %708 = vmatprep.subr.mxu0 0.0
  %709 = vmatpush2.msra.mxu0 0.0
  %710 = vmatprep.subr.mxu0 0.0
  %711 = vmatpush2.msra.mxu0 0.0
  %712 = vmatprep.subr.mxu0 0.0
  %713 = vmatpush2.msra.mxu0 0.0
  %714 = vmatprep.subr.mxu0 0.0
  %715 = vmatpush2.msra.mxu0 0.0
  %716 = vmatprep.subr.mxu0 0.0
  %717 = vmatpush2.msra.mxu0 0.0
  %718 = vmatprep.subr.mxu0 0.0
  %719 = vmatpush2.msra.mxu0 0.0
  %720 = vmatprep.mubr.f32.mxu0 0.0
  %721 = vmatmul.mubr.f32.gmra.mxu0 %v651
  %v722 = vpop.f32.mrf.mxu0
  %v723 = vadd.f32 0.0, %v722
  %v724 = vpop.f32.mrf.mxu0
  %725 = vdwg.mxu0
  %v726 = vxor.u32 %v723, 2147483648
  %v727 = vmul.f32 %v726, 1.442695
  %v728 = vpow.pop %v727
  %v729 = vadd.f32 %v728, 1.0
  %v730 = vrcp.pop %v729
  %v731 = vmul.f32 1.0, %v730
  %732 = vst.msk [vmem:[%s11] sm:$0x3] %vm486, %v731
  // Predicated region
  $region42: #{se_block_forward.3} parent=0 // pred_check
    _
  $region43: #{se_block_forward.3} parent=0 // pred_check_branch
    %734 = sbr.rel (0) target = $region45
  $region44: #{se_block_forward.3} parent=0 // pred_region
    _
  $region45: #{se_block_forward.3} parent=0 // pred_fallthru
    _
  // Predicated region
  $region46: #{se_block_forward.3} parent=0 // pred_check
    _
  $region47: #{se_block_forward.3} parent=0 // pred_check_branch
    %736 = sbr.rel (0) target = $region49
  $region48: #{se_block_forward.3} parent=0 // pred_region
    _
  $region49: #{se_block_forward.3} parent=0 // pred_fallthru
    _
  // Predicated region
  $region50: #{se_block_forward.3} parent=0 // pred_check
    _
  $region51: #{se_block_forward.3} parent=0 // pred_check_branch
    %738 = sbr.rel (0) target = $region53
  $region52: #{se_block_forward.3} parent=0 // pred_region
    _
  $region53: #{se_block_forward.3} parent=0 // pred_fallthru
    _
  // Predicated region
  $region54: #{se_block_forward.3} parent=0 // pred_check
    _
  $region55: #{se_block_forward.3} parent=0 // pred_check_branch
    %740 = sbr.rel (0) target = $region57
  $region56: #{se_block_forward.3} parent=0 // pred_region
    _
  $region57: #{se_block_forward.3} parent=0 // pred_fallthru
    _

</llo_original>
